<compile_context>
chip_gen: v7x
topology: tpu7x:2x2x1
jax: 0.10.0
libtpu: 0.0.40
codegen_flags: <defaults>
</compile_context>

<pallas_src>
import jax
import jax.numpy as jnp
from jax.experimental import pallas as pl
from jax.experimental.pallas import tpu as pltpu

E_CHAR = 50
KERNEL_SIZE = 5
LANE = 128


def _round_up(x, m):
    return (x + m - 1) // m * m


def charcnn_kernel(idx_ref, weff_ref, bconv_ref, whw_ref, bhw_ref, o_ref):
    """One tile of TN words: (lookup+conv) -> relu -> maxpool -> highway.

    idx_ref:   (TN, L) int32        raw char ids for each word of the tile
    weff_ref:  (K*V_pad, E_pad) bf16  emb_table pre-composed with conv weights
    bconv_ref: (1, E_pad) f32
    whw_ref:   (E_pad, 2*E_pad) bf16  [W_proj | W_gate]
    bhw_ref:   (1, 2*E_pad) f32
    o_ref:     (TN, E_pad) f32
    """
    TN, L = idx_ref.shape
    KV, Ep = weff_ref.shape
    K = KERNEL_SIZE
    V_pad = KV // K
    l_out = L - K + 1

    idx = idx_ref[...]                                           # (TN, L) i32
    w_eff = weff_ref[...]                                        # bf16
    # Shared 128-wide iota for every band (hoisted: JAX does not CSE broadcasts).
    iota = jax.lax.broadcasted_iota(jnp.int32, (TN, V_pad), 1)

    def conv_at(t):
        # Per-band one-hot: one compare against the shared iota per tap, one
        # bool->bf16 cast per band, 128-aligned lane concat (free placement).
        # The K bands are disjoint, so this IS the embedding lookup folded
        # into the single conv matmul below.
        bands = [
            (idx[:, t + k:t + k + 1] == iota).astype(jnp.bfloat16)
            for k in range(K)
        ]
        oh = jnp.concatenate(bands, axis=1)                      # (TN, KV) bf16
        return jnp.dot(oh, w_eff, preferred_element_type=jnp.float32)

    # Incremental max over time: only one (TN, KV) one-hot live at a time.
    # Bias add + ReLU are hoisted out of the loop (exact rewrite).
    running = conv_at(0)
    for t in range(1, l_out):
        running = jnp.maximum(running, conv_at(t))
    pooled = jnp.maximum(running + bconv_ref[...], 0.0)          # (TN, E_pad)

    # Highway: fused proj/gate matmul in bf16, then split lanes (128-aligned).
    hw = (jnp.dot(pooled.astype(jnp.bfloat16), whw_ref[...],
                  preferred_element_type=jnp.float32) + bhw_ref[...])
    proj = jnp.maximum(hw[:, :Ep], 0.0)
    gate = jax.nn.sigmoid(hw[:, Ep:])
    o_ref[...] = gate * proj + (1.0 - gate) * pooled
    # TODO(synk): training-mode Dropout(0.3) would use pltpu.prng_seed /
    # pltpu.prng_random_bits here; eval mode is identity.


def model_embeddings_forward(indices, params, *, tile_words=512):
    """indices: (sentence_length, batch_size, max_word_length) int32.
    Returns (sentence_length, batch_size, word_embed_size) float32."""
    emb = params["emb_table"].astype(jnp.float32)            # (V, C)
    wconv = params["wconv"].astype(jnp.float32)              # (K, C, E)
    bconv = params["bconv"].astype(jnp.float32)              # (1, E)
    wproj = params["wproj"].astype(jnp.float32)              # (E, E)
    bproj = params["bproj"].astype(jnp.float32)              # (1, E)
    wgate = params["wgate"].astype(jnp.float32)              # (E, E)
    bgate = params["bgate"].astype(jnp.float32)              # (1, E)

    S, B, L = indices.shape
    V, C = emb.shape
    K, _, E = wconv.shape
    N = S * B
    l_out = L - K + 1
    assert l_out >= 1, "max_word_length must be >= kernel_size"

    E_pad = _round_up(max(E, LANE), LANE)
    V_pad = _round_up(max(V, LANE), LANE)

    # ---- weight packing (once; layout plumbing + exact precompose) ----------
    # Fold the embedding table into the conv weights: W_eff[k] = emb @ Wconv[k].
    # Precompose in f32, cast the packed result to bf16 for the MXU.
    w_eff = jnp.einsum("vc,kce->kve", emb, wconv)                    # (K, V, E)
    w_eff = jnp.pad(w_eff, ((0, 0), (0, V_pad - V), (0, E_pad - E)))
    w_eff = w_eff.reshape(K * V_pad, E_pad).astype(jnp.bfloat16)
    b_conv = jnp.pad(bconv.reshape(1, E), ((0, 0), (0, E_pad - E)))  # f32
    w_hw = jnp.zeros((E_pad, 2 * E_pad), jnp.float32)
    w_hw = w_hw.at[:E, :E].set(wproj).at[:E, E_pad:E_pad + E].set(wgate)
    w_hw = w_hw.astype(jnp.bfloat16)
    b_hw = jnp.zeros((1, 2 * E_pad), jnp.float32)
    b_hw = b_hw.at[0, :E].set(bproj.reshape(-1))
    b_hw = b_hw.at[0, E_pad:E_pad + E].set(bgate.reshape(-1))

    # ---- index plumbing: raw char ids only (no im2col duplication) ----------
    # Tile the word axis in multiples of 8; split so the grid has >= 2 tiles
    # when possible (lets "parallel" use both v7x TensorCores), cap at
    # tile_words (<=512 keeps the per-tile working set v7x-safe).
    TN = _round_up(min(tile_words, max(-(-N // 2), 8)), 8)
    N_pad = _round_up(N, TN)
    idx = indices.reshape(N, L).astype(jnp.int32)
    idx = jnp.pad(idx, ((0, N_pad - N), (0, 0)))   # padded words sliced off later

    grid = (N_pad // TN,)

    out = pl.pallas_call(
        charcnn_kernel,
        out_shape=jax.ShapeDtypeStruct((N_pad, E_pad), jnp.float32),
        grid_spec=pltpu.PrefetchScalarGridSpec(
            num_scalar_prefetch=0,
            grid=grid,
            in_specs=[
                pl.BlockSpec((TN, L), lambda i: (i, 0)),               # char ids
                pl.BlockSpec((K * V_pad, E_pad), lambda i: (0, 0)),    # W_eff
                pl.BlockSpec((1, E_pad), lambda i: (0, 0)),            # b_conv
                pl.BlockSpec((E_pad, 2 * E_pad), lambda i: (0, 0)),    # W_hw
                pl.BlockSpec((1, 2 * E_pad), lambda i: (0, 0)),        # b_hw
            ],
            out_specs=pl.BlockSpec((TN, E_pad), lambda i: (i, 0)),
        ),
        compiler_params=pltpu.CompilerParams(
            dimension_semantics=("parallel",),
            vmem_limit_bytes=32 * 1024 * 1024,
        ),
    )(idx, w_eff, b_conv, w_hw, b_hw)

    # Kept for exact module semantics; consumers that accept the lane-dense
    # (N_pad, 128) slab can skip this narrow slice.
    return out[:N, :E].reshape(S, B, E)


def _reference_forward(indices, params):
    """Pure-JAX f32 reference (gather -> per-tap conv -> highway), same math."""
    emb = jnp.take(params["emb_table"].astype(jnp.float32),
                   indices.reshape(-1), axis=0)
    S, B, L = indices.shape
    C = params["emb_table"].shape[1]
    K, _, E = params["wconv"].shape
    x = emb.reshape(S * B, L, C)
    l_out = L - K + 1
    acc = jnp.zeros((S * B, l_out, E), jnp.float32)
    for k in range(K):
        acc = acc + jnp.einsum("ntc,ce->nte", x[:, k:k + l_out, :],
                               params["wconv"][k])
    acc = acc + params["bconv"]
    pooled = jnp.max(jnp.maximum(acc, 0.0), axis=1)
    proj = jnp.maximum(pooled @ params["wproj"] + params["bproj"], 0.0)
    gate = jax.nn.sigmoid(pooled @ params["wgate"] + params["bgate"])
    out = gate * proj + (1.0 - gate) * pooled
    return out.reshape(S, B, E)


def init_params(key, vocab_size, word_embed_size):
    ks = jax.random.split(key, 7)
    E, C, K = word_embed_size, E_CHAR, KERNEL_SIZE
    return {
        "emb_table": 0.1 * jax.random.normal(ks[0], (vocab_size, C), jnp.float32),
        "wconv":     0.1 * jax.random.normal(ks[1], (K, C, E), jnp.float32),
        "bconv":     0.1 * jax.random.normal(ks[2], (1, E), jnp.float32),
        "wproj":     0.1 * jax.random.normal(ks[3], (E, E), jnp.float32),
        "bproj":     0.1 * jax.random.normal(ks[4], (1, E), jnp.float32),
        "wgate":     0.1 * jax.random.normal(ks[5], (E, E), jnp.float32),
        "bgate":     0.1 * jax.random.normal(ks[6], (1, E), jnp.float32),
    }


if __name__ == "__main__":
    key = jax.random.PRNGKey(0)
    k_param, k_idx = jax.random.split(key)

    sentence_length, batch_size, max_word_length = 4, 2, 12
    vocab_size = 30           # len(vocab.char2id) stand-in
    word_embed_size = 32

    params = init_params(k_param, vocab_size, word_embed_size)
    indices = jax.random.randint(
        k_idx, (sentence_length, batch_size, max_word_length), 0, vocab_size,
        dtype=jnp.int32)

    out = jax.block_until_ready(model_embeddings_forward(indices, params))
    ref = jax.block_until_ready(_reference_forward(indices, params))

    assert out.shape == (sentence_length, batch_size, word_embed_size)
    # bf16 weights on the conv/highway matmuls -> loosened tolerance vs f32 ref.
    assert jnp.allclose(out, ref, rtol=2e-2, atol=2e-2), "mismatch vs reference"

    print("KERNEL_OK")
</pallas_src>

<mosaic_0001>
module attributes {stable_mosaic.version = 11 : i64} {
  func.func @charcnn_kernel(%arg0: i32, %arg1: memref<8x12xi32, #tpu.memory_space<vmem>>, %arg2: memref<640x128xbf16, #tpu.memory_space<vmem>>, %arg3: memref<1x128xf32, #tpu.memory_space<vmem>>, %arg4: memref<128x256xbf16, #tpu.memory_space<vmem>>, %arg5: memref<1x256xf32, #tpu.memory_space<vmem>>, %arg6: memref<8x128xf32, #tpu.memory_space<vmem>>) attributes {dimension_semantics = [#tpu.dimension_semantics<parallel>], iteration_bounds = array<i64: 1>, scalar_prefetch = 0 : i64, scratch_operands = 0 : i64, tpu.core_type = #tpu.core_type<tc>, window_params = [{transform_indices = @transform_0, window_bounds = array<i64: 8, 12>}, {pipeline_mode = #tpu.pipeline_mode<synchronous>, transform_indices = @transform_1, window_bounds = array<i64: 640, 128>}, {pipeline_mode = #tpu.pipeline_mode<synchronous>, transform_indices = @transform_2, window_bounds = array<i64: 1, 128>}, {pipeline_mode = #tpu.pipeline_mode<synchronous>, transform_indices = @transform_3, window_bounds = array<i64: 128, 256>}, {pipeline_mode = #tpu.pipeline_mode<synchronous>, transform_indices = @transform_4, window_bounds = array<i64: 1, 256>}, {transform_indices = @transform_5, window_bounds = array<i64: 8, 128>}]} {
    %c0 = arith.constant 0 : index
    %c0_0 = arith.constant 0 : index
    %0 = vector.load %arg1[%c0, %c0_0] : memref<8x12xi32, #tpu.memory_space<vmem>>, vector<8x12xi32>
    %c0_1 = arith.constant 0 : index
    %c0_2 = arith.constant 0 : index
    %1 = vector.load %arg2[%c0_1, %c0_2] : memref<640x128xbf16, #tpu.memory_space<vmem>>, vector<640x128xbf16>
    %2 = tpu.iota {dimensions = array<i32: 1>} : vector<8x128xi32>
    %3 = vector.extract_strided_slice %0 {offsets = [0, 0], sizes = [8, 1], strides = [1, 1]} : vector<8x12xi32> to vector<8x1xi32>
    %4 = vector.broadcast %3 : vector<8x1xi32> to vector<8x128xi32>
    %5 = arith.cmpi eq, %4, %2 : vector<8x128xi32>
    %6 = arith.extui %5 : vector<8x128xi1> to vector<8x128xi32>
    %7 = arith.sitofp %6 : vector<8x128xi32> to vector<8x128xf32>
    %8 = arith.truncf %7 : vector<8x128xf32> to vector<8x128xbf16>
    %9 = vector.extract_strided_slice %0 {offsets = [0, 1], sizes = [8, 1], strides = [1, 1]} : vector<8x12xi32> to vector<8x1xi32>
    %10 = vector.broadcast %9 : vector<8x1xi32> to vector<8x128xi32>
    %11 = arith.cmpi eq, %10, %2 : vector<8x128xi32>
    %12 = arith.extui %11 : vector<8x128xi1> to vector<8x128xi32>
    %13 = arith.sitofp %12 : vector<8x128xi32> to vector<8x128xf32>
    %14 = arith.truncf %13 : vector<8x128xf32> to vector<8x128xbf16>
    %15 = vector.extract_strided_slice %0 {offsets = [0, 2], sizes = [8, 1], strides = [1, 1]} : vector<8x12xi32> to vector<8x1xi32>
    %16 = vector.broadcast %15 : vector<8x1xi32> to vector<8x128xi32>
    %17 = arith.cmpi eq, %16, %2 : vector<8x128xi32>
    %18 = arith.extui %17 : vector<8x128xi1> to vector<8x128xi32>
    %19 = arith.sitofp %18 : vector<8x128xi32> to vector<8x128xf32>
    %20 = arith.truncf %19 : vector<8x128xf32> to vector<8x128xbf16>
    %21 = vector.extract_strided_slice %0 {offsets = [0, 3], sizes = [8, 1], strides = [1, 1]} : vector<8x12xi32> to vector<8x1xi32>
    %22 = vector.broadcast %21 : vector<8x1xi32> to vector<8x128xi32>
    %23 = arith.cmpi eq, %22, %2 : vector<8x128xi32>
    %24 = arith.extui %23 : vector<8x128xi1> to vector<8x128xi32>
    %25 = arith.sitofp %24 : vector<8x128xi32> to vector<8x128xf32>
    %26 = arith.truncf %25 : vector<8x128xf32> to vector<8x128xbf16>
    %27 = vector.extract_strided_slice %0 {offsets = [0, 4], sizes = [8, 1], strides = [1, 1]} : vector<8x12xi32> to vector<8x1xi32>
    %28 = vector.broadcast %27 : vector<8x1xi32> to vector<8x128xi32>
    %29 = arith.cmpi eq, %28, %2 : vector<8x128xi32>
    %30 = arith.extui %29 : vector<8x128xi1> to vector<8x128xi32>
    %31 = arith.sitofp %30 : vector<8x128xi32> to vector<8x128xf32>
    %32 = arith.truncf %31 : vector<8x128xf32> to vector<8x128xbf16>
    %33 = tpu.concatenate %8, %14, %20, %26, %32 in 1 : vector<8x128xbf16>, vector<8x128xbf16>, vector<8x128xbf16>, vector<8x128xbf16>, vector<8x128xbf16> -> vector<8x640xbf16>
    %cst = arith.constant dense<0.000000e+00> : vector<8x128xf32>
    %34 = tpu.matmul %33, %1, %cst {dimension_numbers = #tpu.dot_dimension_numbers<[1], [0], [0], [1], [0, 0, 1, 1], [], []>} : vector<8x640xbf16>, vector<640x128xbf16>, vector<8x128xf32> -> vector<8x128xf32>
    %35 = vector.extract_strided_slice %0 {offsets = [0, 1], sizes = [8, 1], strides = [1, 1]} : vector<8x12xi32> to vector<8x1xi32>
    %36 = vector.broadcast %35 : vector<8x1xi32> to vector<8x128xi32>
    %37 = arith.cmpi eq, %36, %2 : vector<8x128xi32>
    %38 = arith.extui %37 : vector<8x128xi1> to vector<8x128xi32>
    %39 = arith.sitofp %38 : vector<8x128xi32> to vector<8x128xf32>
    %40 = arith.truncf %39 : vector<8x128xf32> to vector<8x128xbf16>
    %41 = vector.extract_strided_slice %0 {offsets = [0, 2], sizes = [8, 1], strides = [1, 1]} : vector<8x12xi32> to vector<8x1xi32>
    %42 = vector.broadcast %41 : vector<8x1xi32> to vector<8x128xi32>
    %43 = arith.cmpi eq, %42, %2 : vector<8x128xi32>
    %44 = arith.extui %43 : vector<8x128xi1> to vector<8x128xi32>
    %45 = arith.sitofp %44 : vector<8x128xi32> to vector<8x128xf32>
    %46 = arith.truncf %45 : vector<8x128xf32> to vector<8x128xbf16>
    %47 = vector.extract_strided_slice %0 {offsets = [0, 3], sizes = [8, 1], strides = [1, 1]} : vector<8x12xi32> to vector<8x1xi32>
    %48 = vector.broadcast %47 : vector<8x1xi32> to vector<8x128xi32>
    %49 = arith.cmpi eq, %48, %2 : vector<8x128xi32>
    %50 = arith.extui %49 : vector<8x128xi1> to vector<8x128xi32>
    %51 = arith.sitofp %50 : vector<8x128xi32> to vector<8x128xf32>
    %52 = arith.truncf %51 : vector<8x128xf32> to vector<8x128xbf16>
    %53 = vector.extract_strided_slice %0 {offsets = [0, 4], sizes = [8, 1], strides = [1, 1]} : vector<8x12xi32> to vector<8x1xi32>
    %54 = vector.broadcast %53 : vector<8x1xi32> to vector<8x128xi32>
    %55 = arith.cmpi eq, %54, %2 : vector<8x128xi32>
    %56 = arith.extui %55 : vector<8x128xi1> to vector<8x128xi32>
    %57 = arith.sitofp %56 : vector<8x128xi32> to vector<8x128xf32>
    %58 = arith.truncf %57 : vector<8x128xf32> to vector<8x128xbf16>
    %59 = vector.extract_strided_slice %0 {offsets = [0, 5], sizes = [8, 1], strides = [1, 1]} : vector<8x12xi32> to vector<8x1xi32>
    %60 = vector.broadcast %59 : vector<8x1xi32> to vector<8x128xi32>
    %61 = arith.cmpi eq, %60, %2 : vector<8x128xi32>
    %62 = arith.extui %61 : vector<8x128xi1> to vector<8x128xi32>
    %63 = arith.sitofp %62 : vector<8x128xi32> to vector<8x128xf32>
    %64 = arith.truncf %63 : vector<8x128xf32> to vector<8x128xbf16>
    %65 = tpu.concatenate %40, %46, %52, %58, %64 in 1 : vector<8x128xbf16>, vector<8x128xbf16>, vector<8x128xbf16>, vector<8x128xbf16>, vector<8x128xbf16> -> vector<8x640xbf16>
    %cst_3 = arith.constant dense<0.000000e+00> : vector<8x128xf32>
    %66 = tpu.matmul %65, %1, %cst_3 {dimension_numbers = #tpu.dot_dimension_numbers<[1], [0], [0], [1], [0, 0, 1, 1], [], []>} : vector<8x640xbf16>, vector<640x128xbf16>, vector<8x128xf32> -> vector<8x128xf32>
    %67 = arith.maximumf %34, %66 : vector<8x128xf32>
    %68 = vector.extract_strided_slice %0 {offsets = [0, 2], sizes = [8, 1], strides = [1, 1]} : vector<8x12xi32> to vector<8x1xi32>
    %69 = vector.broadcast %68 : vector<8x1xi32> to vector<8x128xi32>
    %70 = arith.cmpi eq, %69, %2 : vector<8x128xi32>
    %71 = arith.extui %70 : vector<8x128xi1> to vector<8x128xi32>
    %72 = arith.sitofp %71 : vector<8x128xi32> to vector<8x128xf32>
    %73 = arith.truncf %72 : vector<8x128xf32> to vector<8x128xbf16>
    %74 = vector.extract_strided_slice %0 {offsets = [0, 3], sizes = [8, 1], strides = [1, 1]} : vector<8x12xi32> to vector<8x1xi32>
    %75 = vector.broadcast %74 : vector<8x1xi32> to vector<8x128xi32>
    %76 = arith.cmpi eq, %75, %2 : vector<8x128xi32>
    %77 = arith.extui %76 : vector<8x128xi1> to vector<8x128xi32>
    %78 = arith.sitofp %77 : vector<8x128xi32> to vector<8x128xf32>
    %79 = arith.truncf %78 : vector<8x128xf32> to vector<8x128xbf16>
    %80 = vector.extract_strided_slice %0 {offsets = [0, 4], sizes = [8, 1], strides = [1, 1]} : vector<8x12xi32> to vector<8x1xi32>
    %81 = vector.broadcast %80 : vector<8x1xi32> to vector<8x128xi32>
    %82 = arith.cmpi eq, %81, %2 : vector<8x128xi32>
    %83 = arith.extui %82 : vector<8x128xi1> to vector<8x128xi32>
    %84 = arith.sitofp %83 : vector<8x128xi32> to vector<8x128xf32>
    %85 = arith.truncf %84 : vector<8x128xf32> to vector<8x128xbf16>
    %86 = vector.extract_strided_slice %0 {offsets = [0, 5], sizes = [8, 1], strides = [1, 1]} : vector<8x12xi32> to vector<8x1xi32>
    %87 = vector.broadcast %86 : vector<8x1xi32> to vector<8x128xi32>
    %88 = arith.cmpi eq, %87, %2 : vector<8x128xi32>
    %89 = arith.extui %88 : vector<8x128xi1> to vector<8x128xi32>
    %90 = arith.sitofp %89 : vector<8x128xi32> to vector<8x128xf32>
    %91 = arith.truncf %90 : vector<8x128xf32> to vector<8x128xbf16>
    %92 = vector.extract_strided_slice %0 {offsets = [0, 6], sizes = [8, 1], strides = [1, 1]} : vector<8x12xi32> to vector<8x1xi32>
    %93 = vector.broadcast %92 : vector<8x1xi32> to vector<8x128xi32>
    %94 = arith.cmpi eq, %93, %2 : vector<8x128xi32>
    %95 = arith.extui %94 : vector<8x128xi1> to vector<8x128xi32>
    %96 = arith.sitofp %95 : vector<8x128xi32> to vector<8x128xf32>
    %97 = arith.truncf %96 : vector<8x128xf32> to vector<8x128xbf16>
    %98 = tpu.concatenate %73, %79, %85, %91, %97 in 1 : vector<8x128xbf16>, vector<8x128xbf16>, vector<8x128xbf16>, vector<8x128xbf16>, vector<8x128xbf16> -> vector<8x640xbf16>
    %cst_4 = arith.constant dense<0.000000e+00> : vector<8x128xf32>
    %99 = tpu.matmul %98, %1, %cst_4 {dimension_numbers = #tpu.dot_dimension_numbers<[1], [0], [0], [1], [0, 0, 1, 1], [], []>} : vector<8x640xbf16>, vector<640x128xbf16>, vector<8x128xf32> -> vector<8x128xf32>
    %100 = arith.maximumf %67, %99 : vector<8x128xf32>
    %101 = vector.extract_strided_slice %0 {offsets = [0, 3], sizes = [8, 1], strides = [1, 1]} : vector<8x12xi32> to vector<8x1xi32>
    %102 = vector.broadcast %101 : vector<8x1xi32> to vector<8x128xi32>
    %103 = arith.cmpi eq, %102, %2 : vector<8x128xi32>
    %104 = arith.extui %103 : vector<8x128xi1> to vector<8x128xi32>
    %105 = arith.sitofp %104 : vector<8x128xi32> to vector<8x128xf32>
    %106 = arith.truncf %105 : vector<8x128xf32> to vector<8x128xbf16>
    %107 = vector.extract_strided_slice %0 {offsets = [0, 4], sizes = [8, 1], strides = [1, 1]} : vector<8x12xi32> to vector<8x1xi32>
    %108 = vector.broadcast %107 : vector<8x1xi32> to vector<8x128xi32>
    %109 = arith.cmpi eq, %108, %2 : vector<8x128xi32>
    %110 = arith.extui %109 : vector<8x128xi1> to vector<8x128xi32>
    %111 = arith.sitofp %110 : vector<8x128xi32> to vector<8x128xf32>
    %112 = arith.truncf %111 : vector<8x128xf32> to vector<8x128xbf16>
    %113 = vector.extract_strided_slice %0 {offsets = [0, 5], sizes = [8, 1], strides = [1, 1]} : vector<8x12xi32> to vector<8x1xi32>
    %114 = vector.broadcast %113 : vector<8x1xi32> to vector<8x128xi32>
    %115 = arith.cmpi eq, %114, %2 : vector<8x128xi32>
    %116 = arith.extui %115 : vector<8x128xi1> to vector<8x128xi32>
    %117 = arith.sitofp %116 : vector<8x128xi32> to vector<8x128xf32>
    %118 = arith.truncf %117 : vector<8x128xf32> to vector<8x128xbf16>
    %119 = vector.extract_strided_slice %0 {offsets = [0, 6], sizes = [8, 1], strides = [1, 1]} : vector<8x12xi32> to vector<8x1xi32>
    %120 = vector.broadcast %119 : vector<8x1xi32> to vector<8x128xi32>
    %121 = arith.cmpi eq, %120, %2 : vector<8x128xi32>
    %122 = arith.extui %121 : vector<8x128xi1> to vector<8x128xi32>
    %123 = arith.sitofp %122 : vector<8x128xi32> to vector<8x128xf32>
    %124 = arith.truncf %123 : vector<8x128xf32> to vector<8x128xbf16>
    %125 = vector.extract_strided_slice %0 {offsets = [0, 7], sizes = [8, 1], strides = [1, 1]} : vector<8x12xi32> to vector<8x1xi32>
    %126 = vector.broadcast %125 : vector<8x1xi32> to vector<8x128xi32>
    %127 = arith.cmpi eq, %126, %2 : vector<8x128xi32>
    %128 = arith.extui %127 : vector<8x128xi1> to vector<8x128xi32>
    %129 = arith.sitofp %128 : vector<8x128xi32> to vector<8x128xf32>
    %130 = arith.truncf %129 : vector<8x128xf32> to vector<8x128xbf16>
    %131 = tpu.concatenate %106, %112, %118, %124, %130 in 1 : vector<8x128xbf16>, vector<8x128xbf16>, vector<8x128xbf16>, vector<8x128xbf16>, vector<8x128xbf16> -> vector<8x640xbf16>
    %cst_5 = arith.constant dense<0.000000e+00> : vector<8x128xf32>
    %132 = tpu.matmul %131, %1, %cst_5 {dimension_numbers = #tpu.dot_dimension_numbers<[1], [0], [0], [1], [0, 0, 1, 1], [], []>} : vector<8x640xbf16>, vector<640x128xbf16>, vector<8x128xf32> -> vector<8x128xf32>
    %133 = arith.maximumf %100, %132 : vector<8x128xf32>
    %134 = vector.extract_strided_slice %0 {offsets = [0, 4], sizes = [8, 1], strides = [1, 1]} : vector<8x12xi32> to vector<8x1xi32>
    %135 = vector.broadcast %134 : vector<8x1xi32> to vector<8x128xi32>
    %136 = arith.cmpi eq, %135, %2 : vector<8x128xi32>
    %137 = arith.extui %136 : vector<8x128xi1> to vector<8x128xi32>
    %138 = arith.sitofp %137 : vector<8x128xi32> to vector<8x128xf32>
    %139 = arith.truncf %138 : vector<8x128xf32> to vector<8x128xbf16>
    %140 = vector.extract_strided_slice %0 {offsets = [0, 5], sizes = [8, 1], strides = [1, 1]} : vector<8x12xi32> to vector<8x1xi32>
    %141 = vector.broadcast %140 : vector<8x1xi32> to vector<8x128xi32>
    %142 = arith.cmpi eq, %141, %2 : vector<8x128xi32>
    %143 = arith.extui %142 : vector<8x128xi1> to vector<8x128xi32>
    %144 = arith.sitofp %143 : vector<8x128xi32> to vector<8x128xf32>
    %145 = arith.truncf %144 : vector<8x128xf32> to vector<8x128xbf16>
    %146 = vector.extract_strided_slice %0 {offsets = [0, 6], sizes = [8, 1], strides = [1, 1]} : vector<8x12xi32> to vector<8x1xi32>
    %147 = vector.broadcast %146 : vector<8x1xi32> to vector<8x128xi32>
    %148 = arith.cmpi eq, %147, %2 : vector<8x128xi32>
    %149 = arith.extui %148 : vector<8x128xi1> to vector<8x128xi32>
    %150 = arith.sitofp %149 : vector<8x128xi32> to vector<8x128xf32>
    %151 = arith.truncf %150 : vector<8x128xf32> to vector<8x128xbf16>
    %152 = vector.extract_strided_slice %0 {offsets = [0, 7], sizes = [8, 1], strides = [1, 1]} : vector<8x12xi32> to vector<8x1xi32>
    %153 = vector.broadcast %152 : vector<8x1xi32> to vector<8x128xi32>
    %154 = arith.cmpi eq, %153, %2 : vector<8x128xi32>
    %155 = arith.extui %154 : vector<8x128xi1> to vector<8x128xi32>
    %156 = arith.sitofp %155 : vector<8x128xi32> to vector<8x128xf32>
    %157 = arith.truncf %156 : vector<8x128xf32> to vector<8x128xbf16>
    %158 = vector.extract_strided_slice %0 {offsets = [0, 8], sizes = [8, 1], strides = [1, 1]} : vector<8x12xi32> to vector<8x1xi32>
    %159 = vector.broadcast %158 : vector<8x1xi32> to vector<8x128xi32>
    %160 = arith.cmpi eq, %159, %2 : vector<8x128xi32>
    %161 = arith.extui %160 : vector<8x128xi1> to vector<8x128xi32>
    %162 = arith.sitofp %161 : vector<8x128xi32> to vector<8x128xf32>
    %163 = arith.truncf %162 : vector<8x128xf32> to vector<8x128xbf16>
    %164 = tpu.concatenate %139, %145, %151, %157, %163 in 1 : vector<8x128xbf16>, vector<8x128xbf16>, vector<8x128xbf16>, vector<8x128xbf16>, vector<8x128xbf16> -> vector<8x640xbf16>
    %cst_6 = arith.constant dense<0.000000e+00> : vector<8x128xf32>
    %165 = tpu.matmul %164, %1, %cst_6 {dimension_numbers = #tpu.dot_dimension_numbers<[1], [0], [0], [1], [0, 0, 1, 1], [], []>} : vector<8x640xbf16>, vector<640x128xbf16>, vector<8x128xf32> -> vector<8x128xf32>
    %166 = arith.maximumf %133, %165 : vector<8x128xf32>
    %167 = vector.extract_strided_slice %0 {offsets = [0, 5], sizes = [8, 1], strides = [1, 1]} : vector<8x12xi32> to vector<8x1xi32>
    %168 = vector.broadcast %167 : vector<8x1xi32> to vector<8x128xi32>
    %169 = arith.cmpi eq, %168, %2 : vector<8x128xi32>
    %170 = arith.extui %169 : vector<8x128xi1> to vector<8x128xi32>
    %171 = arith.sitofp %170 : vector<8x128xi32> to vector<8x128xf32>
    %172 = arith.truncf %171 : vector<8x128xf32> to vector<8x128xbf16>
    %173 = vector.extract_strided_slice %0 {offsets = [0, 6], sizes = [8, 1], strides = [1, 1]} : vector<8x12xi32> to vector<8x1xi32>
    %174 = vector.broadcast %173 : vector<8x1xi32> to vector<8x128xi32>
    %175 = arith.cmpi eq, %174, %2 : vector<8x128xi32>
    %176 = arith.extui %175 : vector<8x128xi1> to vector<8x128xi32>
    %177 = arith.sitofp %176 : vector<8x128xi32> to vector<8x128xf32>
    %178 = arith.truncf %177 : vector<8x128xf32> to vector<8x128xbf16>
    %179 = vector.extract_strided_slice %0 {offsets = [0, 7], sizes = [8, 1], strides = [1, 1]} : vector<8x12xi32> to vector<8x1xi32>
    %180 = vector.broadcast %179 : vector<8x1xi32> to vector<8x128xi32>
    %181 = arith.cmpi eq, %180, %2 : vector<8x128xi32>
    %182 = arith.extui %181 : vector<8x128xi1> to vector<8x128xi32>
    %183 = arith.sitofp %182 : vector<8x128xi32> to vector<8x128xf32>
    %184 = arith.truncf %183 : vector<8x128xf32> to vector<8x128xbf16>
    %185 = vector.extract_strided_slice %0 {offsets = [0, 8], sizes = [8, 1], strides = [1, 1]} : vector<8x12xi32> to vector<8x1xi32>
    %186 = vector.broadcast %185 : vector<8x1xi32> to vector<8x128xi32>
    %187 = arith.cmpi eq, %186, %2 : vector<8x128xi32>
    %188 = arith.extui %187 : vector<8x128xi1> to vector<8x128xi32>
    %189 = arith.sitofp %188 : vector<8x128xi32> to vector<8x128xf32>
    %190 = arith.truncf %189 : vector<8x128xf32> to vector<8x128xbf16>
    %191 = vector.extract_strided_slice %0 {offsets = [0, 9], sizes = [8, 1], strides = [1, 1]} : vector<8x12xi32> to vector<8x1xi32>
    %192 = vector.broadcast %191 : vector<8x1xi32> to vector<8x128xi32>
    %193 = arith.cmpi eq, %192, %2 : vector<8x128xi32>
    %194 = arith.extui %193 : vector<8x128xi1> to vector<8x128xi32>
    %195 = arith.sitofp %194 : vector<8x128xi32> to vector<8x128xf32>
    %196 = arith.truncf %195 : vector<8x128xf32> to vector<8x128xbf16>
    %197 = tpu.concatenate %172, %178, %184, %190, %196 in 1 : vector<8x128xbf16>, vector<8x128xbf16>, vector<8x128xbf16>, vector<8x128xbf16>, vector<8x128xbf16> -> vector<8x640xbf16>
    %cst_7 = arith.constant dense<0.000000e+00> : vector<8x128xf32>
    %198 = tpu.matmul %197, %1, %cst_7 {dimension_numbers = #tpu.dot_dimension_numbers<[1], [0], [0], [1], [0, 0, 1, 1], [], []>} : vector<8x640xbf16>, vector<640x128xbf16>, vector<8x128xf32> -> vector<8x128xf32>
    %199 = arith.maximumf %166, %198 : vector<8x128xf32>
    %200 = vector.extract_strided_slice %0 {offsets = [0, 6], sizes = [8, 1], strides = [1, 1]} : vector<8x12xi32> to vector<8x1xi32>
    %201 = vector.broadcast %200 : vector<8x1xi32> to vector<8x128xi32>
    %202 = arith.cmpi eq, %201, %2 : vector<8x128xi32>
    %203 = arith.extui %202 : vector<8x128xi1> to vector<8x128xi32>
    %204 = arith.sitofp %203 : vector<8x128xi32> to vector<8x128xf32>
    %205 = arith.truncf %204 : vector<8x128xf32> to vector<8x128xbf16>
    %206 = vector.extract_strided_slice %0 {offsets = [0, 7], sizes = [8, 1], strides = [1, 1]} : vector<8x12xi32> to vector<8x1xi32>
    %207 = vector.broadcast %206 : vector<8x1xi32> to vector<8x128xi32>
    %208 = arith.cmpi eq, %207, %2 : vector<8x128xi32>
    %209 = arith.extui %208 : vector<8x128xi1> to vector<8x128xi32>
    %210 = arith.sitofp %209 : vector<8x128xi32> to vector<8x128xf32>
    %211 = arith.truncf %210 : vector<8x128xf32> to vector<8x128xbf16>
    %212 = vector.extract_strided_slice %0 {offsets = [0, 8], sizes = [8, 1], strides = [1, 1]} : vector<8x12xi32> to vector<8x1xi32>
    %213 = vector.broadcast %212 : vector<8x1xi32> to vector<8x128xi32>
    %214 = arith.cmpi eq, %213, %2 : vector<8x128xi32>
    %215 = arith.extui %214 : vector<8x128xi1> to vector<8x128xi32>
    %216 = arith.sitofp %215 : vector<8x128xi32> to vector<8x128xf32>
    %217 = arith.truncf %216 : vector<8x128xf32> to vector<8x128xbf16>
    %218 = vector.extract_strided_slice %0 {offsets = [0, 9], sizes = [8, 1], strides = [1, 1]} : vector<8x12xi32> to vector<8x1xi32>
    %219 = vector.broadcast %218 : vector<8x1xi32> to vector<8x128xi32>
    %220 = arith.cmpi eq, %219, %2 : vector<8x128xi32>
    %221 = arith.extui %220 : vector<8x128xi1> to vector<8x128xi32>
    %222 = arith.sitofp %221 : vector<8x128xi32> to vector<8x128xf32>
    %223 = arith.truncf %222 : vector<8x128xf32> to vector<8x128xbf16>
    %224 = vector.extract_strided_slice %0 {offsets = [0, 10], sizes = [8, 1], strides = [1, 1]} : vector<8x12xi32> to vector<8x1xi32>
    %225 = vector.broadcast %224 : vector<8x1xi32> to vector<8x128xi32>
    %226 = arith.cmpi eq, %225, %2 : vector<8x128xi32>
    %227 = arith.extui %226 : vector<8x128xi1> to vector<8x128xi32>
    %228 = arith.sitofp %227 : vector<8x128xi32> to vector<8x128xf32>
    %229 = arith.truncf %228 : vector<8x128xf32> to vector<8x128xbf16>
    %230 = tpu.concatenate %205, %211, %217, %223, %229 in 1 : vector<8x128xbf16>, vector<8x128xbf16>, vector<8x128xbf16>, vector<8x128xbf16>, vector<8x128xbf16> -> vector<8x640xbf16>
    %cst_8 = arith.constant dense<0.000000e+00> : vector<8x128xf32>
    %231 = tpu.matmul %230, %1, %cst_8 {dimension_numbers = #tpu.dot_dimension_numbers<[1], [0], [0], [1], [0, 0, 1, 1], [], []>} : vector<8x640xbf16>, vector<640x128xbf16>, vector<8x128xf32> -> vector<8x128xf32>
    %232 = arith.maximumf %199, %231 : vector<8x128xf32>
    %233 = vector.extract_strided_slice %0 {offsets = [0, 7], sizes = [8, 1], strides = [1, 1]} : vector<8x12xi32> to vector<8x1xi32>
    %234 = vector.broadcast %233 : vector<8x1xi32> to vector<8x128xi32>
    %235 = arith.cmpi eq, %234, %2 : vector<8x128xi32>
    %236 = arith.extui %235 : vector<8x128xi1> to vector<8x128xi32>
    %237 = arith.sitofp %236 : vector<8x128xi32> to vector<8x128xf32>
    %238 = arith.truncf %237 : vector<8x128xf32> to vector<8x128xbf16>
    %239 = vector.extract_strided_slice %0 {offsets = [0, 8], sizes = [8, 1], strides = [1, 1]} : vector<8x12xi32> to vector<8x1xi32>
    %240 = vector.broadcast %239 : vector<8x1xi32> to vector<8x128xi32>
    %241 = arith.cmpi eq, %240, %2 : vector<8x128xi32>
    %242 = arith.extui %241 : vector<8x128xi1> to vector<8x128xi32>
    %243 = arith.sitofp %242 : vector<8x128xi32> to vector<8x128xf32>
    %244 = arith.truncf %243 : vector<8x128xf32> to vector<8x128xbf16>
    %245 = vector.extract_strided_slice %0 {offsets = [0, 9], sizes = [8, 1], strides = [1, 1]} : vector<8x12xi32> to vector<8x1xi32>
    %246 = vector.broadcast %245 : vector<8x1xi32> to vector<8x128xi32>
    %247 = arith.cmpi eq, %246, %2 : vector<8x128xi32>
    %248 = arith.extui %247 : vector<8x128xi1> to vector<8x128xi32>
    %249 = arith.sitofp %248 : vector<8x128xi32> to vector<8x128xf32>
    %250 = arith.truncf %249 : vector<8x128xf32> to vector<8x128xbf16>
    %251 = vector.extract_strided_slice %0 {offsets = [0, 10], sizes = [8, 1], strides = [1, 1]} : vector<8x12xi32> to vector<8x1xi32>
    %252 = vector.broadcast %251 : vector<8x1xi32> to vector<8x128xi32>
    %253 = arith.cmpi eq, %252, %2 : vector<8x128xi32>
    %254 = arith.extui %253 : vector<8x128xi1> to vector<8x128xi32>
    %255 = arith.sitofp %254 : vector<8x128xi32> to vector<8x128xf32>
    %256 = arith.truncf %255 : vector<8x128xf32> to vector<8x128xbf16>
    %257 = vector.extract_strided_slice %0 {offsets = [0, 11], sizes = [8, 1], strides = [1, 1]} : vector<8x12xi32> to vector<8x1xi32>
    %258 = vector.broadcast %257 : vector<8x1xi32> to vector<8x128xi32>
    %259 = arith.cmpi eq, %258, %2 : vector<8x128xi32>
    %260 = arith.extui %259 : vector<8x128xi1> to vector<8x128xi32>
    %261 = arith.sitofp %260 : vector<8x128xi32> to vector<8x128xf32>
    %262 = arith.truncf %261 : vector<8x128xf32> to vector<8x128xbf16>
    %263 = tpu.concatenate %238, %244, %250, %256, %262 in 1 : vector<8x128xbf16>, vector<8x128xbf16>, vector<8x128xbf16>, vector<8x128xbf16>, vector<8x128xbf16> -> vector<8x640xbf16>
    %cst_9 = arith.constant dense<0.000000e+00> : vector<8x128xf32>
    %264 = tpu.matmul %263, %1, %cst_9 {dimension_numbers = #tpu.dot_dimension_numbers<[1], [0], [0], [1], [0, 0, 1, 1], [], []>} : vector<8x640xbf16>, vector<640x128xbf16>, vector<8x128xf32> -> vector<8x128xf32>
    %265 = arith.maximumf %232, %264 : vector<8x128xf32>
    %c0_10 = arith.constant 0 : index
    %c0_11 = arith.constant 0 : index
    %266 = vector.load %arg3[%c0_10, %c0_11] : memref<1x128xf32, #tpu.memory_space<vmem>>, vector<1x128xf32>
    %267 = vector.broadcast %266 : vector<1x128xf32> to vector<8x128xf32>
    %268 = arith.addf %265, %267 : vector<8x128xf32>
    %cst_12 = arith.constant 0.000000e+00 : f32
    %269 = vector.broadcast %cst_12 : f32 to vector<8x128xf32>
    %270 = arith.maximumf %268, %269 : vector<8x128xf32>
    %271 = arith.truncf %270 : vector<8x128xf32> to vector<8x128xbf16>
    %c0_13 = arith.constant 0 : index
    %c0_14 = arith.constant 0 : index
    %272 = vector.load %arg4[%c0_13, %c0_14] : memref<128x256xbf16, #tpu.memory_space<vmem>>, vector<128x256xbf16>
    %cst_15 = arith.constant dense<0.000000e+00> : vector<8x256xf32>
    %273 = tpu.matmul %271, %272, %cst_15 {dimension_numbers = #tpu.dot_dimension_numbers<[1], [0], [0], [1], [0, 0, 1, 1], [], []>} : vector<8x128xbf16>, vector<128x256xbf16>, vector<8x256xf32> -> vector<8x256xf32>
    %c0_16 = arith.constant 0 : index
    %c0_17 = arith.constant 0 : index
    %274 = vector.load %arg5[%c0_16, %c0_17] : memref<1x256xf32, #tpu.memory_space<vmem>>, vector<1x256xf32>
    %275 = vector.broadcast %274 : vector<1x256xf32> to vector<8x256xf32>
    %276 = arith.addf %273, %275 : vector<8x256xf32>
    %277 = vector.extract_strided_slice %276 {offsets = [0, 0], sizes = [8, 128], strides = [1, 1]} : vector<8x256xf32> to vector<8x128xf32>
    %cst_18 = arith.constant 0.000000e+00 : f32
    %278 = vector.broadcast %cst_18 : f32 to vector<8x128xf32>
    %279 = arith.maximumf %277, %278 : vector<8x128xf32>
    %280 = vector.extract_strided_slice %276 {offsets = [0, 128], sizes = [8, 128], strides = [1, 1]} : vector<8x256xf32> to vector<8x128xf32>
    %281 = arith.negf %280 : vector<8x128xf32>
    %282 = math.exp %281 : vector<8x128xf32>
    %cst_19 = arith.constant 1.000000e+00 : f32
    %283 = vector.broadcast %cst_19 : f32 to vector<8x128xf32>
    %284 = arith.addf %283, %282 : vector<8x128xf32>
    %285 = arith.divf %283, %284 : vector<8x128xf32>
    %286 = arith.mulf %285, %279 : vector<8x128xf32>
    %cst_20 = arith.constant 1.000000e+00 : f32
    %287 = vector.broadcast %cst_20 : f32 to vector<8x128xf32>
    %288 = arith.subf %287, %285 : vector<8x128xf32>
    %289 = arith.mulf %288, %270 : vector<8x128xf32>
    %290 = arith.addf %286, %289 : vector<8x128xf32>
    %c0_21 = arith.constant 0 : index
    %c0_22 = arith.constant 0 : index
    %291 = vector.load %arg6[%c0_21, %c0_22] : memref<8x128xf32, #tpu.memory_space<vmem>>, vector<8x128xf32>
    tpu.vector_store %arg6[%c0_21, %c0_22], %290 {strides = array<i32>} : memref<8x128xf32, #tpu.memory_space<vmem>>, vector<8x128xf32>,
    return
  }
  func.func @transform_0(%arg0: i32) -> (i32, i32) {
    %c0_i32 = arith.constant 0 : i32
    %c0_i32_0 = arith.constant 0 : i32
    return %arg0, %c0_i32 : i32, i32
  }
  func.func @transform_1(%arg0: i32) -> (i32, i32) {
    %c0_i32 = arith.constant 0 : i32
    %c0_i32_0 = arith.constant 0 : i32
    %c0_i32_1 = arith.constant 0 : i32
    return %c0_i32, %c0_i32_0 : i32, i32
  }
  func.func @transform_2(%arg0: i32) -> (i32, i32) {
    %c0_i32 = arith.constant 0 : i32
    %c0_i32_0 = arith.constant 0 : i32
    %c0_i32_1 = arith.constant 0 : i32
    return %c0_i32, %c0_i32_0 : i32, i32
  }
  func.func @transform_3(%arg0: i32) -> (i32, i32) {
    %c0_i32 = arith.constant 0 : i32
    %c0_i32_0 = arith.constant 0 : i32
    %c0_i32_1 = arith.constant 0 : i32
    return %c0_i32, %c0_i32_0 : i32, i32
  }
  func.func @transform_4(%arg0: i32) -> (i32, i32) {
    %c0_i32 = arith.constant 0 : i32
    %c0_i32_0 = arith.constant 0 : i32
    %c0_i32_1 = arith.constant 0 : i32
    return %c0_i32, %c0_i32_0 : i32, i32
  }
  func.func @transform_5(%arg0: i32) -> (i32, i32) {
    %c0_i32 = arith.constant 0 : i32
    %c0_i32_0 = arith.constant 0 : i32
    return %arg0, %c0_i32 : i32, i32
  }
}

</mosaic_0001>

<llo_original>
// kernel: tpu_custom_call.1
$region0: #{tpu_custom_call.1}
  #allocation0 [shape = 'u32[]', space=smem, size = 0x4, offset = 0x4, fixed_abs, tag = 'smem constant byte address 0x4 - core index']
  #allocation1 [shape = 'u32[144,128]{1,0:T(1,128)}', space=vmem, size = 0x12000, scoped, tag = 'internal scratch']
  %s0 = inlined_call_operand.hbm [shape: s32[8,12], index: 0, kind: input, shape index: {}]
  %s1 = inlined_call_operand.hbm [shape: bf16[640,128], index: 1, kind: input, shape index: {}]
  %s2 = inlined_call_operand.vmem [shape: f32[1,128], index: 2, kind: input, shape index: {}]
  %s3 = inlined_call_operand.hbm [shape: bf16[128,256], index: 3, kind: input, shape index: {}]
  %s4 = inlined_call_operand.vmem [shape: f32[1,256], index: 4, kind: input, shape index: {}]
  %s5 = inlined_call_operand.hbm [shape: f32[8,128], index: 5, kind: output, shape index: {}]
  %s6 = sld [smem:[#allocation0]]
  $region42: #{tpu_custom_call.1} parent=0
    _
  %s8 = ssub.s32 1, %s6
  %s9 = scalar_select 0, %s8, %s6
  $region1: #{tpu_custom_call.1} parent=0
    #allocation2 [shape = 'u8[4096]{0}', space=vmem, size = 0x1000, scoped, tag = 'input window, operand 0, single buffered']
    #allocation3 [shape = 's32[1]{0}', space=sflag, size = 0x4, scoped, tag = 'scoped memory for tpu_custom_call.1']
    #allocation4 [shape = 's32[1]{0}', space=sflag, size = 0x4, scoped, tag = 'scoped memory for tpu_custom_call.1']
    #allocation5 [shape = 'u8[163840]{0}', space=vmem, size = 0x28000, scoped, tag = 'input window, operand 1, single buffered']
    #allocation6 [shape = 's32[1]{0}', space=sflag, size = 0x4, scoped, tag = 'scoped memory for tpu_custom_call.1']
    #allocation7 [shape = 'u8[65536]{0}', space=vmem, size = 0x10000, scoped, tag = 'input window, operand 3, single buffered']
    #allocation8 [shape = 'u8[4096]{0}', space=vmem, size = 0x1000, scoped, tag = 'output window, operand 0, single buffered']
    %10 = vsyncpa [#allocation3], 0
    %11 = vsyncpa [#allocation6], 0
    %12 = vsyncpa [#allocation4], 0
    // Predicated region
    $region2: #{tpu_custom_call.1} parent=1 // pred_check
      _
    $region3: #{tpu_custom_call.1} parent=1 // pred_check_branch
      %14 = sbr.rel (0) target = $region5
    $region4: #{tpu_custom_call.1} parent=1 // pred_region
      %s16 = ssub.s32 128, 128
      %17 = vsyncadd [#allocation3], %s16
      %s19 = sshll.u32 [#allocation2], 4
      %s20 = int_to_ptr.vmem [resolvable:$true] %s19
      %22 = dma.hbm_to_vmem [thread:$0]  %s0, 128, %s20, [#allocation3]
    $region5: #{tpu_custom_call.1} parent=1 // pred_fallthru
      _
    // Predicated region
    $region6: #{tpu_custom_call.1} parent=1 // pred_check
      _
    $region7: #{tpu_custom_call.1} parent=1 // pred_check_branch
      %24 = sbr.rel (0) target = $region9
    $region8: #{tpu_custom_call.1} parent=1 // pred_region
      %s26 = ssub.s32 5120, 5120
      %27 = vsyncadd [#allocation6], %s26
      %s28 = sshll.u32 [#allocation5], 4
      %s29 = int_to_ptr.vmem [resolvable:$true] %s28
      %34 = dma.hbm_to_vmem [thread:$0]  %s1, 5120, %s29, [#allocation6], 64, 64, 4
    $region9: #{tpu_custom_call.1} parent=1 // pred_fallthru
      _
    // Predicated region
    $region10: #{tpu_custom_call.1} parent=1 // pred_check
      _
    $region11: #{tpu_custom_call.1} parent=1 // pred_check_branch
      %36 = sbr.rel (0) target = $region13
    $region12: #{tpu_custom_call.1} parent=1 // pred_region
      _
    $region13: #{tpu_custom_call.1} parent=1 // pred_fallthru
      _
    // Predicated region
    $region14: #{tpu_custom_call.1} parent=1 // pred_check
      _
    $region15: #{tpu_custom_call.1} parent=1 // pred_check_branch
      %38 = sbr.rel (0) target = $region17
    $region16: #{tpu_custom_call.1} parent=1 // pred_region
      %s40 = ssub.s32 2048, 2048
      %41 = vsyncadd [#allocation6], %s40
      %s42 = sshll.u32 [#allocation7], 4
      %s43 = int_to_ptr.vmem [resolvable:$true] %s42
      %48 = dma.hbm_to_vmem [thread:$0]  %s3, 2048, %s43, [#allocation6], 128, 128, 8
    $region17: #{tpu_custom_call.1} parent=1 // pred_fallthru
      _
    // Predicated region
    $region18: #{tpu_custom_call.1} parent=1 // pred_check
      _
    $region19: #{tpu_custom_call.1} parent=1 // pred_check_branch
      %50 = sbr.rel (0) target = $region21
    $region20: #{tpu_custom_call.1} parent=1 // pred_region
      _
    $region21: #{tpu_custom_call.1} parent=1 // pred_fallthru
      _
    // Predicated region
    $region22: #{tpu_custom_call.1} parent=1 // pred_check
      _
    $region23: #{tpu_custom_call.1} parent=1 // pred_check_branch
      %52 = sbr.rel (0) target = $region25
    $region24: #{tpu_custom_call.1} parent=1 // pred_region
      %53 = dma.done [#allocation3], 128
    $region25: #{tpu_custom_call.1} parent=1 // pred_fallthru
      _
    // Predicated region
    $region26: #{tpu_custom_call.1} parent=1 // pred_check
      _
    $region27: #{tpu_custom_call.1} parent=1 // pred_check_branch
      %55 = sbr.rel (0) target = $region29
    $region28: #{tpu_custom_call.1} parent=1 // pred_region
      %56 = dma.done [#allocation6], 5120
    $region29: #{tpu_custom_call.1} parent=1 // pred_fallthru
      _
    // Predicated region
    $region30: #{tpu_custom_call.1} parent=1 // pred_check
      _
    $region31: #{tpu_custom_call.1} parent=1 // pred_check_branch
      %58 = sbr.rel (0) target = $region33
    $region32: #{tpu_custom_call.1} parent=1 // pred_region
      %59 = dma.done [#allocation6], 2048
    $region33: #{tpu_custom_call.1} parent=1 // pred_fallthru
      _
    %v61 = vld [vmem:[#allocation2] sm:$0xff]
    %v62 = vld [vmem:[#allocation5] sm:$0xf]
    %v63 = vld [vmem:[#allocation5 + $0x4] sm:$0xf]
    %v64 = vld [vmem:[#allocation5 + $0x8] sm:$0xf]
    %v65 = vld [vmem:[#allocation5 + $0xc] sm:$0xf]
    %v66 = vld [vmem:[#allocation5 + $0x10] sm:$0xf]
    %v67 = vld [vmem:[#allocation5 + $0x14] sm:$0xf]
    %v68 = vld [vmem:[#allocation5 + $0x18] sm:$0xf]
    %v69 = vld [vmem:[#allocation5 + $0x1c] sm:$0xf]
    %v70 = vld [vmem:[#allocation5 + $0x20] sm:$0xf]
    %v71 = vld [vmem:[#allocation5 + $0x24] sm:$0xf]
    %v72 = vld [vmem:[#allocation5 + $0x28] sm:$0xf]
    %v73 = vld [vmem:[#allocation5 + $0x2c] sm:$0xf]
    %v74 = vld [vmem:[#allocation5 + $0x30] sm:$0xf]
    %v75 = vld [vmem:[#allocation5 + $0x34] sm:$0xf]
    %v76 = vld [vmem:[#allocation5 + $0x38] sm:$0xf]
    %v77 = vld [vmem:[#allocation5 + $0x3c] sm:$0xf]
    %v78 = vld [vmem:[#allocation5 + $0x40] sm:$0xf]
    %v79 = vld [vmem:[#allocation5 + $0x44] sm:$0xf]
    %v80 = vld [vmem:[#allocation5 + $0x48] sm:$0xf]
    %v81 = vld [vmem:[#allocation5 + $0x4c] sm:$0xf]
    %v82 = vld [vmem:[#allocation5 + $0x50] sm:$0xf]
    %v83 = vld [vmem:[#allocation5 + $0x54] sm:$0xf]
    %v84 = vld [vmem:[#allocation5 + $0x58] sm:$0xf]
    %v85 = vld [vmem:[#allocation5 + $0x5c] sm:$0xf]
    %v86 = vld [vmem:[#allocation5 + $0x60] sm:$0xf]
    %v87 = vld [vmem:[#allocation5 + $0x64] sm:$0xf]
    %v88 = vld [vmem:[#allocation5 + $0x68] sm:$0xf]
    %v89 = vld [vmem:[#allocation5 + $0x6c] sm:$0xf]
    %v90 = vld [vmem:[#allocation5 + $0x70] sm:$0xf]
    %v91 = vld [vmem:[#allocation5 + $0x74] sm:$0xf]
    %v92 = vld [vmem:[#allocation5 + $0x78] sm:$0xf]
    %v93 = vld [vmem:[#allocation5 + $0x7c] sm:$0xf]
    %v94 = vld [vmem:[#allocation5 + $0x80] sm:$0xf]
    %v95 = vld [vmem:[#allocation5 + $0x84] sm:$0xf]
    %v96 = vld [vmem:[#allocation5 + $0x88] sm:$0xf]
    %v97 = vld [vmem:[#allocation5 + $0x8c] sm:$0xf]
    %v98 = vld [vmem:[#allocation5 + $0x90] sm:$0xf]
    %v99 = vld [vmem:[#allocation5 + $0x94] sm:$0xf]
    %v100 = vld [vmem:[#allocation5 + $0x98] sm:$0xf]
    %v101 = vld [vmem:[#allocation5 + $0x9c] sm:$0xf]
    %v102 = vld [vmem:[#allocation5 + $0xa0] sm:$0xf]
    %v103 = vld [vmem:[#allocation5 + $0xa4] sm:$0xf]
    %v104 = vld [vmem:[#allocation5 + $0xa8] sm:$0xf]
    %v105 = vld [vmem:[#allocation5 + $0xac] sm:$0xf]
    %v106 = vld [vmem:[#allocation5 + $0xb0] sm:$0xf]
    %v107 = vld [vmem:[#allocation5 + $0xb4] sm:$0xf]
    %v108 = vld [vmem:[#allocation5 + $0xb8] sm:$0xf]
    %v109 = vld [vmem:[#allocation5 + $0xbc] sm:$0xf]
    %v110 = vld [vmem:[#allocation5 + $0xc0] sm:$0xf]
    %v111 = vld [vmem:[#allocation5 + $0xc4] sm:$0xf]
    %v112 = vld [vmem:[#allocation5 + $0xc8] sm:$0xf]
    %v113 = vld [vmem:[#allocation5 + $0xcc] sm:$0xf]
    %v114 = vld [vmem:[#allocation5 + $0xd0] sm:$0xf]
    %v115 = vld [vmem:[#allocation5 + $0xd4] sm:$0xf]
    %v116 = vld [vmem:[#allocation5 + $0xd8] sm:$0xf]
    %v117 = vld [vmem:[#allocation5 + $0xdc] sm:$0xf]
    %v118 = vld [vmem:[#allocation5 + $0xe0] sm:$0xf]
    %v119 = vld [vmem:[#allocation5 + $0xe4] sm:$0xf]
    %v120 = vld [vmem:[#allocation5 + $0xe8] sm:$0xf]
    %v121 = vld [vmem:[#allocation5 + $0xec] sm:$0xf]
    %v122 = vld [vmem:[#allocation5 + $0xf0] sm:$0xf]
    %v123 = vld [vmem:[#allocation5 + $0xf4] sm:$0xf]
    %v124 = vld [vmem:[#allocation5 + $0xf8] sm:$0xf]
    %v125 = vld [vmem:[#allocation5 + $0xfc] sm:$0xf]
    %v126 = vld [vmem:[#allocation5 + $0x100] sm:$0xf]
    %v127 = vld [vmem:[#allocation5 + $0x104] sm:$0xf]
    %v128 = vld [vmem:[#allocation5 + $0x108] sm:$0xf]
    %v129 = vld [vmem:[#allocation5 + $0x10c] sm:$0xf]
    %v130 = vld [vmem:[#allocation5 + $0x110] sm:$0xf]
    %v131 = vld [vmem:[#allocation5 + $0x114] sm:$0xf]
    %v132 = vld [vmem:[#allocation5 + $0x118] sm:$0xf]
    %v133 = vld [vmem:[#allocation5 + $0x11c] sm:$0xf]
    %v134 = vld [vmem:[#allocation5 + $0x120] sm:$0xf]
    %v135 = vld [vmem:[#allocation5 + $0x124] sm:$0xf]
    %v136 = vld [vmem:[#allocation5 + $0x128] sm:$0xf]
    %v137 = vld [vmem:[#allocation5 + $0x12c] sm:$0xf]
    %v138 = vld [vmem:[#allocation5 + $0x130] sm:$0xf]
    %v139 = vld [vmem:[#allocation5 + $0x134] sm:$0xf]
    %v140 = vld [vmem:[#allocation5 + $0x138] sm:$0xf]
    %v141 = vld [vmem:[#allocation5 + $0x13c] sm:$0xf]
    %v142 = vlaneseq
    %v143 = vand.u32 %v142, 127
    %144 = vset.pattern.permute.xlu0 0
    %145 = vperm.xlu0 %144, %v61
    %v146 = vpop.permute.xlu0 %145
    %vm147 = vcmp.eq.s32.totalorder %v146, %v143
    %v148 = vsel %vm147, 1, 0
    %v149 = vcvt.s32.f32 %v148
    %v150 = vpack.c.bf16 %v149, %v149
    %151 = vset.pattern.permute.xlu0 1
    %152 = vperm.xlu0 %151, %v61
    %v153 = vpop.permute.xlu0 %152
    %vm154 = vcmp.eq.s32.totalorder %v153, %v143
    %v155 = vsel %vm154, 1, 0
    %v156 = vcvt.s32.f32 %v155
    %v157 = vpack.c.bf16 %v156, %v156
    %158 = vset.pattern.permute.xlu0 2
    %159 = vperm.xlu0 %158, %v61
    %v160 = vpop.permute.xlu0 %159
    %vm161 = vcmp.eq.s32.totalorder %v160, %v143
    %v162 = vsel %vm161, 1, 0
    %v163 = vcvt.s32.f32 %v162
    %v164 = vpack.c.bf16 %v163, %v163
    %165 = vset.pattern.permute.xlu0 3
    %166 = vperm.xlu0 %165, %v61
    %v167 = vpop.permute.xlu0 %166
    %vm168 = vcmp.eq.s32.totalorder %v167, %v143
    %v169 = vsel %vm168, 1, 0
    %v170 = vcvt.s32.f32 %v169
    %v171 = vpack.c.bf16 %v170, %v170
    %172 = vset.pattern.permute.xlu0 4
    %173 = vperm.xlu0 %172, %v61
    %v174 = vpop.permute.xlu0 %173
    %vm175 = vcmp.eq.s32.totalorder %v174, %v143
    %v176 = vsel %vm175, 1, 0
    %v177 = vcvt.s32.f32 %v176
    %v178 = vpack.c.bf16 %v177, %v177
    %v259 = vunpack.c.l.b16 %v62
    %v260 = vunpack.c.l.b16 %v63
    %v261 = vunpack.c.l.b16 %v64
    %v262 = vunpack.c.l.b16 %v65
    %v263 = vunpack.c.l.b16 %v66
    %v264 = vunpack.c.l.b16 %v67
    %v265 = vunpack.c.l.b16 %v68
    %v266 = vunpack.c.l.b16 %v69
    %v267 = vunpack.c.l.b16 %v70
    %v268 = vunpack.c.l.b16 %v71
    %v269 = vunpack.c.l.b16 %v72
    %v270 = vunpack.c.l.b16 %v73
    %v271 = vunpack.c.l.b16 %v74
    %v272 = vunpack.c.l.b16 %v75
    %v273 = vunpack.c.l.b16 %v76
    %v274 = vunpack.c.l.b16 %v77
    %v275 = vunpack.c.l.b16 %v78
    %v276 = vunpack.c.l.b16 %v79
    %v277 = vunpack.c.l.b16 %v80
    %v278 = vunpack.c.l.b16 %v81
    %v279 = vunpack.c.l.b16 %v82
    %v280 = vunpack.c.l.b16 %v83
    %v281 = vunpack.c.l.b16 %v84
    %v282 = vunpack.c.l.b16 %v85
    %v283 = vunpack.c.l.b16 %v86
    %v284 = vunpack.c.l.b16 %v87
    %v285 = vunpack.c.l.b16 %v88
    %v286 = vunpack.c.l.b16 %v89
    %v287 = vunpack.c.l.b16 %v90
    %v288 = vunpack.c.l.b16 %v91
    %v289 = vunpack.c.l.b16 %v92
    %v290 = vunpack.c.l.b16 %v93
    %v291 = vunpack.c.l.b16 %v94
    %v292 = vunpack.c.l.b16 %v95
    %v293 = vunpack.c.l.b16 %v96
    %v294 = vunpack.c.l.b16 %v97
    %v295 = vunpack.c.l.b16 %v98
    %v296 = vunpack.c.l.b16 %v99
    %v297 = vunpack.c.l.b16 %v100
    %v298 = vunpack.c.l.b16 %v101
    %v299 = vunpack.c.l.b16 %v102
    %v300 = vunpack.c.l.b16 %v103
    %v301 = vunpack.c.l.b16 %v104
    %v302 = vunpack.c.l.b16 %v105
    %v303 = vunpack.c.l.b16 %v106
    %v304 = vunpack.c.l.b16 %v107
    %v305 = vunpack.c.l.b16 %v108
    %v306 = vunpack.c.l.b16 %v109
    %v307 = vunpack.c.l.b16 %v110
    %v308 = vunpack.c.l.b16 %v111
    %v309 = vunpack.c.l.b16 %v112
    %v310 = vunpack.c.l.b16 %v113
    %v311 = vunpack.c.l.b16 %v114
    %v312 = vunpack.c.l.b16 %v115
    %v313 = vunpack.c.l.b16 %v116
    %v314 = vunpack.c.l.b16 %v117
    %v315 = vunpack.c.l.b16 %v118
    %v316 = vunpack.c.l.b16 %v119
    %v317 = vunpack.c.l.b16 %v120
    %v318 = vunpack.c.l.b16 %v121
    %v319 = vunpack.c.l.b16 %v122
    %v320 = vunpack.c.l.b16 %v123
    %v321 = vunpack.c.l.b16 %v124
    %v322 = vunpack.c.l.b16 %v125
    %v323 = vunpack.c.l.b16 %v126
    %v324 = vunpack.c.l.b16 %v127
    %v325 = vunpack.c.l.b16 %v128
    %v326 = vunpack.c.l.b16 %v129
    %v327 = vunpack.c.l.b16 %v130
    %v328 = vunpack.c.l.b16 %v131
    %v329 = vunpack.c.l.b16 %v132
    %v330 = vunpack.c.l.b16 %v133
    %v331 = vunpack.c.l.b16 %v134
    %v332 = vunpack.c.l.b16 %v135
    %v333 = vunpack.c.l.b16 %v136
    %v334 = vunpack.c.l.b16 %v137
    %v335 = vunpack.c.l.b16 %v138
    %v336 = vunpack.c.l.b16 %v139
    %v337 = vunpack.c.l.b16 %v140
    %v338 = vunpack.c.l.b16 %v141
    %v339 = vpack.c.b16 %v260, %v259
    %v340 = vpack.c.b16 %v262, %v261
    %v341 = vpack.c.b16 %v264, %v263
    %v342 = vpack.c.b16 %v266, %v265
    %v343 = vpack.c.b16 %v268, %v267
    %v344 = vpack.c.b16 %v270, %v269
    %v345 = vpack.c.b16 %v272, %v271
    %v346 = vpack.c.b16 %v274, %v273
    %v347 = vpack.c.b16 %v276, %v275
    %v348 = vpack.c.b16 %v278, %v277
    %v349 = vpack.c.b16 %v280, %v279
    %v350 = vpack.c.b16 %v282, %v281
    %v351 = vpack.c.b16 %v284, %v283
    %v352 = vpack.c.b16 %v286, %v285
    %v353 = vpack.c.b16 %v288, %v287
    %v354 = vpack.c.b16 %v290, %v289
    %v355 = vpack.c.b16 %v292, %v291
    %v356 = vpack.c.b16 %v294, %v293
    %v357 = vpack.c.b16 %v296, %v295
    %v358 = vpack.c.b16 %v298, %v297
    %v359 = vpack.c.b16 %v300, %v299
    %v360 = vpack.c.b16 %v302, %v301
    %v361 = vpack.c.b16 %v304, %v303
    %v362 = vpack.c.b16 %v306, %v305
    %v363 = vpack.c.b16 %v308, %v307
    %v364 = vpack.c.b16 %v310, %v309
    %v365 = vpack.c.b16 %v312, %v311
    %v366 = vpack.c.b16 %v314, %v313
    %v367 = vpack.c.b16 %v316, %v315
    %v368 = vpack.c.b16 %v318, %v317
    %v369 = vpack.c.b16 %v320, %v319
    %v370 = vpack.c.b16 %v322, %v321
    %v371 = vpack.c.b16 %v324, %v323
    %v372 = vpack.c.b16 %v326, %v325
    %v373 = vpack.c.b16 %v328, %v327
    %v374 = vpack.c.b16 %v330, %v329
    %v375 = vpack.c.b16 %v332, %v331
    %v376 = vpack.c.b16 %v334, %v333
    %v377 = vpack.c.b16 %v336, %v335
    %v378 = vpack.c.b16 %v338, %v337
    %419 = vmatprep.subr.bf16.mxu0 0
    %420 = vmatpush1.bf16.msra.mxu0 %v339
    %421 = vmatprep.subr.bf16.mxu0 0
    %422 = vmatpush1.bf16.msra.mxu0 %v340
    %423 = vmatprep.subr.bf16.mxu0 0
    %424 = vmatpush1.bf16.msra.mxu0 %v341
    %425 = vmatprep.subr.bf16.mxu0 0
    %426 = vmatpush1.bf16.msra.mxu0 %v342
    %427 = vmatprep.subr.bf16.mxu0 0
    %428 = vmatpush1.bf16.msra.mxu0 %v343
    %429 = vmatprep.subr.bf16.mxu0 0
    %430 = vmatpush1.bf16.msra.mxu0 %v344
    %431 = vmatprep.subr.bf16.mxu0 0
    %432 = vmatpush1.bf16.msra.mxu0 %v345
    %433 = vmatprep.subr.bf16.mxu0 0
    %434 = vmatpush1.bf16.msra.mxu0 %v346
    %435 = vmatprep.subr.bf16.mxu0 0
    %436 = vmatpush1.bf16.msra.mxu0 %v347
    %437 = vmatprep.subr.bf16.mxu0 0
    %438 = vmatpush1.bf16.msra.mxu0 %v348
    %439 = vmatprep.subr.bf16.mxu0 0
    %440 = vmatpush1.bf16.msra.mxu0 %v349
    %441 = vmatprep.subr.bf16.mxu0 0
    %442 = vmatpush1.bf16.msra.mxu0 %v350
    %443 = vmatprep.subr.bf16.mxu0 0
    %444 = vmatpush1.bf16.msra.mxu0 %v351
    %445 = vmatprep.subr.bf16.mxu0 0
    %446 = vmatpush1.bf16.msra.mxu0 %v352
    %447 = vmatprep.subr.bf16.mxu0 0
    %448 = vmatpush1.bf16.msra.mxu0 %v353
    %449 = vmatprep.subr.bf16.mxu0 0
    %450 = vmatpush1.bf16.msra.mxu0 %v354
    %451 = vmatprep.mubr.bf16.mxu0 %v157
    %452 = vmatmul.mubr.bf16.gmra.mrb[0].mxu0 %v150
    %v453 = vpop.f32.mrb[0].mxu0
    %v454 = vadd.f32 0.0, %v453
    %v455 = vpop.f32.mrb[0].mxu0
    %v456 = vpop.f32.mrb[0].mxu0
    %v457 = vpop.f32.mrb[0].mxu0
    %458 = vdwg.mxu0
    %459 = vmatprep.subr.bf16.mxu0 0
    %460 = vmatpush1.bf16.msra.mxu0 %v355
    %461 = vmatprep.subr.bf16.mxu0 0
    %462 = vmatpush1.bf16.msra.mxu0 %v356
    %463 = vmatprep.subr.bf16.mxu0 0
    %464 = vmatpush1.bf16.msra.mxu0 %v357
    %465 = vmatprep.subr.bf16.mxu0 0
    %466 = vmatpush1.bf16.msra.mxu0 %v358
    %467 = vmatprep.subr.bf16.mxu0 0
    %468 = vmatpush1.bf16.msra.mxu0 %v359
    %469 = vmatprep.subr.bf16.mxu0 0
    %470 = vmatpush1.bf16.msra.mxu0 %v360
    %471 = vmatprep.subr.bf16.mxu0 0
    %472 = vmatpush1.bf16.msra.mxu0 %v361
    %473 = vmatprep.subr.bf16.mxu0 0
    %474 = vmatpush1.bf16.msra.mxu0 %v362
    %475 = vmatprep.subr.bf16.mxu0 0
    %476 = vmatpush1.bf16.msra.mxu0 %v363
    %477 = vmatprep.subr.bf16.mxu0 0
    %478 = vmatpush1.bf16.msra.mxu0 %v364
    %479 = vmatprep.subr.bf16.mxu0 0
    %480 = vmatpush1.bf16.msra.mxu0 %v365
    %481 = vmatprep.subr.bf16.mxu0 0
    %482 = vmatpush1.bf16.msra.mxu0 %v366
    %483 = vmatprep.subr.bf16.mxu0 0
    %484 = vmatpush1.bf16.msra.mxu0 %v367
    %485 = vmatprep.subr.bf16.mxu0 0
    %486 = vmatpush1.bf16.msra.mxu0 %v368
    %487 = vmatprep.subr.bf16.mxu0 0
    %488 = vmatpush1.bf16.msra.mxu0 %v369
    %489 = vmatprep.subr.bf16.mxu0 0
    %490 = vmatpush1.bf16.msra.mxu0 %v370
    %491 = vmatprep.mubr.bf16.mxu0 %v171
    %492 = vmatmul.mubr.bf16.gmra.mrb[0].mxu0 %v164
    %v493 = vpop.f32.mrb[0].mxu0
    %v494 = vadd.f32 %v454, %v493
    %v495 = vpop.f32.mrb[0].mxu0
    %v496 = vpop.f32.mrb[0].mxu0
    %v497 = vpop.f32.mrb[0].mxu0
    %498 = vdwg.mxu0
    %499 = vmatprep.subr.bf16.mxu0 0
    %500 = vmatpush1.bf16.msra.mxu0 %v371
    %501 = vmatprep.subr.bf16.mxu0 0
    %502 = vmatpush1.bf16.msra.mxu0 %v372
    %503 = vmatprep.subr.bf16.mxu0 0
    %504 = vmatpush1.bf16.msra.mxu0 %v373
    %505 = vmatprep.subr.bf16.mxu0 0
    %506 = vmatpush1.bf16.msra.mxu0 %v374
    %507 = vmatprep.subr.bf16.mxu0 0
    %508 = vmatpush1.bf16.msra.mxu0 %v375
    %509 = vmatprep.subr.bf16.mxu0 0
    %510 = vmatpush1.bf16.msra.mxu0 %v376
    %511 = vmatprep.subr.bf16.mxu0 0
    %512 = vmatpush1.bf16.msra.mxu0 %v377
    %513 = vmatprep.subr.bf16.mxu0 0
    %514 = vmatpush1.bf16.msra.mxu0 %v378
    %515 = vmatprep.subr.bf16.mxu0 0
    %516 = vmatpush1.bf16.msra.mxu0 0
    %517 = vmatprep.subr.bf16.mxu0 0
    %518 = vmatpush1.bf16.msra.mxu0 0
    %519 = vmatprep.subr.bf16.mxu0 0
    %520 = vmatpush1.bf16.msra.mxu0 0
    %521 = vmatprep.subr.bf16.mxu0 0
    %522 = vmatpush1.bf16.msra.mxu0 0
    %523 = vmatprep.subr.bf16.mxu0 0
    %524 = vmatpush1.bf16.msra.mxu0 0
    %525 = vmatprep.subr.bf16.mxu0 0
    %526 = vmatpush1.bf16.msra.mxu0 0
    %527 = vmatprep.subr.bf16.mxu0 0
    %528 = vmatpush1.bf16.msra.mxu0 0
    %529 = vmatprep.subr.bf16.mxu0 0
    %530 = vmatpush1.bf16.msra.mxu0 0
    %531 = vmatprep.mubr.bf16.mxu0 0
    %532 = vmatmul.mubr.bf16.gmra.mrb[0].mxu0 %v178
    %v533 = vpop.f32.mrb[0].mxu0
    %v534 = vadd.f32 %v494, %v533
    %v535 = vpop.f32.mrb[0].mxu0
    %v536 = vpop.f32.mrb[0].mxu0
    %v537 = vpop.f32.mrb[0].mxu0
    %538 = vdwg.mxu0
    %539 = vset.pattern.permute.xlu0 5
    %540 = vperm.xlu0 %539, %v61
    %v541 = vpop.permute.xlu0 %540
    %vm542 = vcmp.eq.s32.totalorder %v541, %v143
    %v543 = vsel %vm542, 1, 0
    %v544 = vcvt.s32.f32 %v543
    %v545 = vpack.c.bf16 %v544, %v544
    %546 = vmatprep.subr.bf16.mxu0 0
    %547 = vmatpush1.bf16.msra.mxu0 %v339
    %548 = vmatprep.subr.bf16.mxu0 0
    %549 = vmatpush1.bf16.msra.mxu0 %v340
    %550 = vmatprep.subr.bf16.mxu0 0
    %551 = vmatpush1.bf16.msra.mxu0 %v341
    %552 = vmatprep.subr.bf16.mxu0 0
    %553 = vmatpush1.bf16.msra.mxu0 %v342
    %554 = vmatprep.subr.bf16.mxu0 0
    %555 = vmatpush1.bf16.msra.mxu0 %v343
    %556 = vmatprep.subr.bf16.mxu0 0
    %557 = vmatpush1.bf16.msra.mxu0 %v344
    %558 = vmatprep.subr.bf16.mxu0 0
    %559 = vmatpush1.bf16.msra.mxu0 %v345
    %560 = vmatprep.subr.bf16.mxu0 0
    %561 = vmatpush1.bf16.msra.mxu0 %v346
    %562 = vmatprep.subr.bf16.mxu0 0
    %563 = vmatpush1.bf16.msra.mxu0 %v347
    %564 = vmatprep.subr.bf16.mxu0 0
    %565 = vmatpush1.bf16.msra.mxu0 %v348
    %566 = vmatprep.subr.bf16.mxu0 0
    %567 = vmatpush1.bf16.msra.mxu0 %v349
    %568 = vmatprep.subr.bf16.mxu0 0
    %569 = vmatpush1.bf16.msra.mxu0 %v350
    %570 = vmatprep.subr.bf16.mxu0 0
    %571 = vmatpush1.bf16.msra.mxu0 %v351
    %572 = vmatprep.subr.bf16.mxu0 0
    %573 = vmatpush1.bf16.msra.mxu0 %v352
    %574 = vmatprep.subr.bf16.mxu0 0
    %575 = vmatpush1.bf16.msra.mxu0 %v353
    %576 = vmatprep.subr.bf16.mxu0 0
    %577 = vmatpush1.bf16.msra.mxu0 %v354
    %578 = vmatprep.mubr.bf16.mxu0 %v164
    %579 = vmatmul.mubr.bf16.gmra.mrb[0].mxu0 %v157
    %v580 = vpop.f32.mrb[0].mxu0
    %v581 = vadd.f32 0.0, %v580
    %v582 = vpop.f32.mrb[0].mxu0
    %v583 = vpop.f32.mrb[0].mxu0
    %v584 = vpop.f32.mrb[0].mxu0
    %585 = vdwg.mxu0
    %586 = vmatprep.subr.bf16.mxu0 0
    %587 = vmatpush1.bf16.msra.mxu0 %v355
    %588 = vmatprep.subr.bf16.mxu0 0
    %589 = vmatpush1.bf16.msra.mxu0 %v356
    %590 = vmatprep.subr.bf16.mxu0 0
    %591 = vmatpush1.bf16.msra.mxu0 %v357
    %592 = vmatprep.subr.bf16.mxu0 0
    %593 = vmatpush1.bf16.msra.mxu0 %v358
    %594 = vmatprep.subr.bf16.mxu0 0
    %595 = vmatpush1.bf16.msra.mxu0 %v359
    %596 = vmatprep.subr.bf16.mxu0 0
    %597 = vmatpush1.bf16.msra.mxu0 %v360
    %598 = vmatprep.subr.bf16.mxu0 0
    %599 = vmatpush1.bf16.msra.mxu0 %v361
    %600 = vmatprep.subr.bf16.mxu0 0
    %601 = vmatpush1.bf16.msra.mxu0 %v362
    %602 = vmatprep.subr.bf16.mxu0 0
    %603 = vmatpush1.bf16.msra.mxu0 %v363
    %604 = vmatprep.subr.bf16.mxu0 0
    %605 = vmatpush1.bf16.msra.mxu0 %v364
    %606 = vmatprep.subr.bf16.mxu0 0
    %607 = vmatpush1.bf16.msra.mxu0 %v365
    %608 = vmatprep.subr.bf16.mxu0 0
    %609 = vmatpush1.bf16.msra.mxu0 %v366
    %610 = vmatprep.subr.bf16.mxu0 0
    %611 = vmatpush1.bf16.msra.mxu0 %v367
    %612 = vmatprep.subr.bf16.mxu0 0
    %613 = vmatpush1.bf16.msra.mxu0 %v368
    %614 = vmatprep.subr.bf16.mxu0 0
    %615 = vmatpush1.bf16.msra.mxu0 %v369
    %616 = vmatprep.subr.bf16.mxu0 0
    %617 = vmatpush1.bf16.msra.mxu0 %v370
    %618 = vmatprep.mubr.bf16.mxu0 %v178
    %619 = vmatmul.mubr.bf16.gmra.mrb[0].mxu0 %v171
    %v620 = vpop.f32.mrb[0].mxu0
    %v621 = vadd.f32 %v581, %v620
    %v622 = vpop.f32.mrb[0].mxu0
    %v623 = vpop.f32.mrb[0].mxu0
    %v624 = vpop.f32.mrb[0].mxu0
    %625 = vdwg.mxu0
    %626 = vmatprep.subr.bf16.mxu0 0
    %627 = vmatpush1.bf16.msra.mxu0 %v371
    %628 = vmatprep.subr.bf16.mxu0 0
    %629 = vmatpush1.bf16.msra.mxu0 %v372
    %630 = vmatprep.subr.bf16.mxu0 0
    %631 = vmatpush1.bf16.msra.mxu0 %v373
    %632 = vmatprep.subr.bf16.mxu0 0
    %633 = vmatpush1.bf16.msra.mxu0 %v374
    %634 = vmatprep.subr.bf16.mxu0 0
    %635 = vmatpush1.bf16.msra.mxu0 %v375
    %636 = vmatprep.subr.bf16.mxu0 0
    %637 = vmatpush1.bf16.msra.mxu0 %v376
    %638 = vmatprep.subr.bf16.mxu0 0
    %639 = vmatpush1.bf16.msra.mxu0 %v377
    %640 = vmatprep.subr.bf16.mxu0 0
    %641 = vmatpush1.bf16.msra.mxu0 %v378
    %642 = vmatprep.subr.bf16.mxu0 0
    %643 = vmatpush1.bf16.msra.mxu0 0
    %644 = vmatprep.subr.bf16.mxu0 0
    %645 = vmatpush1.bf16.msra.mxu0 0
    %646 = vmatprep.subr.bf16.mxu0 0
    %647 = vmatpush1.bf16.msra.mxu0 0
    %648 = vmatprep.subr.bf16.mxu0 0
    %649 = vmatpush1.bf16.msra.mxu0 0
    %650 = vmatprep.subr.bf16.mxu0 0
    %651 = vmatpush1.bf16.msra.mxu0 0
    %652 = vmatprep.subr.bf16.mxu0 0
    %653 = vmatpush1.bf16.msra.mxu0 0
    %654 = vmatprep.subr.bf16.mxu0 0
    %655 = vmatpush1.bf16.msra.mxu0 0
    %656 = vmatprep.subr.bf16.mxu0 0
    %657 = vmatpush1.bf16.msra.mxu0 0
    %658 = vmatprep.mubr.bf16.mxu0 0
    %659 = vmatmul.mubr.bf16.gmra.mrb[0].mxu0 %v545
    %v660 = vpop.f32.mrb[0].mxu0
    %v661 = vadd.f32 %v621, %v660
    %v662 = vpop.f32.mrb[0].mxu0
    %v663 = vpop.f32.mrb[0].mxu0
    %v664 = vpop.f32.mrb[0].mxu0
    %665 = vdwg.mxu0
    %v666 = vmax.f32 %v534, %v661
    %667 = vset.pattern.permute.xlu0 6
    %668 = vperm.xlu0 %667, %v61
    %v669 = vpop.permute.xlu0 %668
    %vm670 = vcmp.eq.s32.totalorder %v669, %v143
    %v671 = vsel %vm670, 1, 0
    %v672 = vcvt.s32.f32 %v671
    %v673 = vpack.c.bf16 %v672, %v672
    %674 = vmatprep.subr.bf16.mxu0 0
    %675 = vmatpush1.bf16.msra.mxu0 %v339
    %676 = vmatprep.subr.bf16.mxu0 0
    %677 = vmatpush1.bf16.msra.mxu0 %v340
    %678 = vmatprep.subr.bf16.mxu0 0
    %679 = vmatpush1.bf16.msra.mxu0 %v341
    %680 = vmatprep.subr.bf16.mxu0 0
    %681 = vmatpush1.bf16.msra.mxu0 %v342
    %682 = vmatprep.subr.bf16.mxu0 0
    %683 = vmatpush1.bf16.msra.mxu0 %v343
    %684 = vmatprep.subr.bf16.mxu0 0
    %685 = vmatpush1.bf16.msra.mxu0 %v344
    %686 = vmatprep.subr.bf16.mxu0 0
    %687 = vmatpush1.bf16.msra.mxu0 %v345
    %688 = vmatprep.subr.bf16.mxu0 0
    %689 = vmatpush1.bf16.msra.mxu0 %v346
    %690 = vmatprep.subr.bf16.mxu0 0
    %691 = vmatpush1.bf16.msra.mxu0 %v347
    %692 = vmatprep.subr.bf16.mxu0 0
    %693 = vmatpush1.bf16.msra.mxu0 %v348
    %694 = vmatprep.subr.bf16.mxu0 0
    %695 = vmatpush1.bf16.msra.mxu0 %v349
    %696 = vmatprep.subr.bf16.mxu0 0
    %697 = vmatpush1.bf16.msra.mxu0 %v350
    %698 = vmatprep.subr.bf16.mxu0 0
    %699 = vmatpush1.bf16.msra.mxu0 %v351
    %700 = vmatprep.subr.bf16.mxu0 0
    %701 = vmatpush1.bf16.msra.mxu0 %v352
    %702 = vmatprep.subr.bf16.mxu0 0
    %703 = vmatpush1.bf16.msra.mxu0 %v353
    %704 = vmatprep.subr.bf16.mxu0 0
    %705 = vmatpush1.bf16.msra.mxu0 %v354
    %706 = vmatprep.mubr.bf16.mxu0 %v171
    %707 = vmatmul.mubr.bf16.gmra.mrb[0].mxu0 %v164
    %v708 = vpop.f32.mrb[0].mxu0
    %v709 = vadd.f32 0.0, %v708
    %v710 = vpop.f32.mrb[0].mxu0
    %v711 = vpop.f32.mrb[0].mxu0
    %v712 = vpop.f32.mrb[0].mxu0
    %713 = vdwg.mxu0
    %714 = vmatprep.subr.bf16.mxu0 0
    %715 = vmatpush1.bf16.msra.mxu0 %v355
    %716 = vmatprep.subr.bf16.mxu0 0
    %717 = vmatpush1.bf16.msra.mxu0 %v356
    %718 = vmatprep.subr.bf16.mxu0 0
    %719 = vmatpush1.bf16.msra.mxu0 %v357
    %720 = vmatprep.subr.bf16.mxu0 0
    %721 = vmatpush1.bf16.msra.mxu0 %v358
    %722 = vmatprep.subr.bf16.mxu0 0
    %723 = vmatpush1.bf16.msra.mxu0 %v359
    %724 = vmatprep.subr.bf16.mxu0 0
    %725 = vmatpush1.bf16.msra.mxu0 %v360
    %726 = vmatprep.subr.bf16.mxu0 0
    %727 = vmatpush1.bf16.msra.mxu0 %v361
    %728 = vmatprep.subr.bf16.mxu0 0
    %729 = vmatpush1.bf16.msra.mxu0 %v362
    %730 = vmatprep.subr.bf16.mxu0 0
    %731 = vmatpush1.bf16.msra.mxu0 %v363
    %732 = vmatprep.subr.bf16.mxu0 0
    %733 = vmatpush1.bf16.msra.mxu0 %v364
    %734 = vmatprep.subr.bf16.mxu0 0
    %735 = vmatpush1.bf16.msra.mxu0 %v365
    %736 = vmatprep.subr.bf16.mxu0 0
    %737 = vmatpush1.bf16.msra.mxu0 %v366
    %738 = vmatprep.subr.bf16.mxu0 0
    %739 = vmatpush1.bf16.msra.mxu0 %v367
    %740 = vmatprep.subr.bf16.mxu0 0
    %741 = vmatpush1.bf16.msra.mxu0 %v368
    %742 = vmatprep.subr.bf16.mxu0 0
    %743 = vmatpush1.bf16.msra.mxu0 %v369
    %744 = vmatprep.subr.bf16.mxu0 0
    %745 = vmatpush1.bf16.msra.mxu0 %v370
    %746 = vmatprep.mubr.bf16.mxu0 %v545
    %747 = vmatmul.mubr.bf16.gmra.mrb[0].mxu0 %v178
    %v748 = vpop.f32.mrb[0].mxu0
    %v749 = vadd.f32 %v709, %v748
    %v750 = vpop.f32.mrb[0].mxu0
    %v751 = vpop.f32.mrb[0].mxu0
    %v752 = vpop.f32.mrb[0].mxu0
    %753 = vdwg.mxu0
    %754 = vmatprep.subr.bf16.mxu0 0
    %755 = vmatpush1.bf16.msra.mxu0 %v371
    %756 = vmatprep.subr.bf16.mxu0 0
    %757 = vmatpush1.bf16.msra.mxu0 %v372
    %758 = vmatprep.subr.bf16.mxu0 0
    %759 = vmatpush1.bf16.msra.mxu0 %v373
    %760 = vmatprep.subr.bf16.mxu0 0
    %761 = vmatpush1.bf16.msra.mxu0 %v374
    %762 = vmatprep.subr.bf16.mxu0 0
    %763 = vmatpush1.bf16.msra.mxu0 %v375
    %764 = vmatprep.subr.bf16.mxu0 0
    %765 = vmatpush1.bf16.msra.mxu0 %v376
    %766 = vmatprep.subr.bf16.mxu0 0
    %767 = vmatpush1.bf16.msra.mxu0 %v377
    %768 = vmatprep.subr.bf16.mxu0 0
    %769 = vmatpush1.bf16.msra.mxu0 %v378
    %770 = vmatprep.subr.bf16.mxu0 0
    %771 = vmatpush1.bf16.msra.mxu0 0
    %772 = vmatprep.subr.bf16.mxu0 0
    %773 = vmatpush1.bf16.msra.mxu0 0
    %774 = vmatprep.subr.bf16.mxu0 0
    %775 = vmatpush1.bf16.msra.mxu0 0
    %776 = vmatprep.subr.bf16.mxu0 0
    %777 = vmatpush1.bf16.msra.mxu0 0
    %778 = vmatprep.subr.bf16.mxu0 0
    %779 = vmatpush1.bf16.msra.mxu0 0
    %780 = vmatprep.subr.bf16.mxu0 0
    %781 = vmatpush1.bf16.msra.mxu0 0
    %782 = vmatprep.subr.bf16.mxu0 0
    %783 = vmatpush1.bf16.msra.mxu0 0
    %784 = vmatprep.subr.bf16.mxu0 0
    %785 = vmatpush1.bf16.msra.mxu0 0
    %786 = vmatprep.mubr.bf16.mxu0 0
    %787 = vmatmul.mubr.bf16.gmra.mrb[0].mxu0 %v673
    %v788 = vpop.f32.mrb[0].mxu0
    %v789 = vadd.f32 %v749, %v788
    %v790 = vpop.f32.mrb[0].mxu0
    %v791 = vpop.f32.mrb[0].mxu0
    %v792 = vpop.f32.mrb[0].mxu0
    %793 = vdwg.mxu0
    %v794 = vmax.f32 %v666, %v789
    %795 = vset.pattern.permute.xlu0 7
    %796 = vperm.xlu0 %795, %v61
    %v797 = vpop.permute.xlu0 %796
    %vm798 = vcmp.eq.s32.totalorder %v797, %v143
    %v799 = vsel %vm798, 1, 0
    %v800 = vcvt.s32.f32 %v799
    %v801 = vpack.c.bf16 %v800, %v800
    %802 = vmatprep.subr.bf16.mxu0 0
    %803 = vmatpush1.bf16.msra.mxu0 %v339
    %804 = vmatprep.subr.bf16.mxu0 0
    %805 = vmatpush1.bf16.msra.mxu0 %v340
    %806 = vmatprep.subr.bf16.mxu0 0
    %807 = vmatpush1.bf16.msra.mxu0 %v341
    %808 = vmatprep.subr.bf16.mxu0 0
    %809 = vmatpush1.bf16.msra.mxu0 %v342
    %810 = vmatprep.subr.bf16.mxu0 0
    %811 = vmatpush1.bf16.msra.mxu0 %v343
    %812 = vmatprep.subr.bf16.mxu0 0
    %813 = vmatpush1.bf16.msra.mxu0 %v344
    %814 = vmatprep.subr.bf16.mxu0 0
    %815 = vmatpush1.bf16.msra.mxu0 %v345
    %816 = vmatprep.subr.bf16.mxu0 0
    %817 = vmatpush1.bf16.msra.mxu0 %v346
    %818 = vmatprep.subr.bf16.mxu0 0
    %819 = vmatpush1.bf16.msra.mxu0 %v347
    %820 = vmatprep.subr.bf16.mxu0 0
    %821 = vmatpush1.bf16.msra.mxu0 %v348
    %822 = vmatprep.subr.bf16.mxu0 0
    %823 = vmatpush1.bf16.msra.mxu0 %v349
    %824 = vmatprep.subr.bf16.mxu0 0
    %825 = vmatpush1.bf16.msra.mxu0 %v350
    %826 = vmatprep.subr.bf16.mxu0 0
    %827 = vmatpush1.bf16.msra.mxu0 %v351
    %828 = vmatprep.subr.bf16.mxu0 0
    %829 = vmatpush1.bf16.msra.mxu0 %v352
    %830 = vmatprep.subr.bf16.mxu0 0
    %831 = vmatpush1.bf16.msra.mxu0 %v353
    %832 = vmatprep.subr.bf16.mxu0 0
    %833 = vmatpush1.bf16.msra.mxu0 %v354
    %834 = vmatprep.mubr.bf16.mxu0 %v178
    %835 = vmatmul.mubr.bf16.gmra.mrb[0].mxu0 %v171
    %v836 = vpop.f32.mrb[0].mxu0
    %v837 = vadd.f32 0.0, %v836
    %v838 = vpop.f32.mrb[0].mxu0
    %v839 = vpop.f32.mrb[0].mxu0
    %v840 = vpop.f32.mrb[0].mxu0
    %841 = vdwg.mxu0
    %842 = vmatprep.subr.bf16.mxu0 0
    %843 = vmatpush1.bf16.msra.mxu0 %v355
    %844 = vmatprep.subr.bf16.mxu0 0
    %845 = vmatpush1.bf16.msra.mxu0 %v356
    %846 = vmatprep.subr.bf16.mxu0 0
    %847 = vmatpush1.bf16.msra.mxu0 %v357
    %848 = vmatprep.subr.bf16.mxu0 0
    %849 = vmatpush1.bf16.msra.mxu0 %v358
    %850 = vmatprep.subr.bf16.mxu0 0
    %851 = vmatpush1.bf16.msra.mxu0 %v359
    %852 = vmatprep.subr.bf16.mxu0 0
    %853 = vmatpush1.bf16.msra.mxu0 %v360
    %854 = vmatprep.subr.bf16.mxu0 0
    %855 = vmatpush1.bf16.msra.mxu0 %v361
    %856 = vmatprep.subr.bf16.mxu0 0
    %857 = vmatpush1.bf16.msra.mxu0 %v362
    %858 = vmatprep.subr.bf16.mxu0 0
    %859 = vmatpush1.bf16.msra.mxu0 %v363
    %860 = vmatprep.subr.bf16.mxu0 0
    %861 = vmatpush1.bf16.msra.mxu0 %v364
    %862 = vmatprep.subr.bf16.mxu0 0
    %863 = vmatpush1.bf16.msra.mxu0 %v365
    %864 = vmatprep.subr.bf16.mxu0 0
    %865 = vmatpush1.bf16.msra.mxu0 %v366
    %866 = vmatprep.subr.bf16.mxu0 0
    %867 = vmatpush1.bf16.msra.mxu0 %v367
    %868 = vmatprep.subr.bf16.mxu0 0
    %869 = vmatpush1.bf16.msra.mxu0 %v368
    %870 = vmatprep.subr.bf16.mxu0 0
    %871 = vmatpush1.bf16.msra.mxu0 %v369
    %872 = vmatprep.subr.bf16.mxu0 0
    %873 = vmatpush1.bf16.msra.mxu0 %v370
    %874 = vmatprep.mubr.bf16.mxu0 %v673
    %875 = vmatmul.mubr.bf16.gmra.mrb[0].mxu0 %v545
    %v876 = vpop.f32.mrb[0].mxu0
    %v877 = vadd.f32 %v837, %v876
    %v878 = vpop.f32.mrb[0].mxu0
    %v879 = vpop.f32.mrb[0].mxu0
    %v880 = vpop.f32.mrb[0].mxu0
    %881 = vdwg.mxu0
    %882 = vmatprep.subr.bf16.mxu0 0
    %883 = vmatpush1.bf16.msra.mxu0 %v371
    %884 = vmatprep.subr.bf16.mxu0 0
    %885 = vmatpush1.bf16.msra.mxu0 %v372
    %886 = vmatprep.subr.bf16.mxu0 0
    %887 = vmatpush1.bf16.msra.mxu0 %v373
    %888 = vmatprep.subr.bf16.mxu0 0
    %889 = vmatpush1.bf16.msra.mxu0 %v374
    %890 = vmatprep.subr.bf16.mxu0 0
    %891 = vmatpush1.bf16.msra.mxu0 %v375
    %892 = vmatprep.subr.bf16.mxu0 0
    %893 = vmatpush1.bf16.msra.mxu0 %v376
    %894 = vmatprep.subr.bf16.mxu0 0
    %895 = vmatpush1.bf16.msra.mxu0 %v377
    %896 = vmatprep.subr.bf16.mxu0 0
    %897 = vmatpush1.bf16.msra.mxu0 %v378
    %898 = vmatprep.subr.bf16.mxu0 0
    %899 = vmatpush1.bf16.msra.mxu0 0
    %900 = vmatprep.subr.bf16.mxu0 0
    %901 = vmatpush1.bf16.msra.mxu0 0
    %902 = vmatprep.subr.bf16.mxu0 0
    %903 = vmatpush1.bf16.msra.mxu0 0
    %904 = vmatprep.subr.bf16.mxu0 0
    %905 = vmatpush1.bf16.msra.mxu0 0
    %906 = vmatprep.subr.bf16.mxu0 0
    %907 = vmatpush1.bf16.msra.mxu0 0
    %908 = vmatprep.subr.bf16.mxu0 0
    %909 = vmatpush1.bf16.msra.mxu0 0
    %910 = vmatprep.subr.bf16.mxu0 0
    %911 = vmatpush1.bf16.msra.mxu0 0
    %912 = vmatprep.subr.bf16.mxu0 0
    %913 = vmatpush1.bf16.msra.mxu0 0
    %914 = vmatprep.mubr.bf16.mxu0 0
    %915 = vmatmul.mubr.bf16.gmra.mrb[0].mxu0 %v801
    %v916 = vpop.f32.mrb[0].mxu0
    %v917 = vadd.f32 %v877, %v916
    %v918 = vpop.f32.mrb[0].mxu0
    %v919 = vpop.f32.mrb[0].mxu0
    %v920 = vpop.f32.mrb[0].mxu0
    %921 = vdwg.mxu0
    %v922 = vmax.f32 %v794, %v917
    %923 = vset.pattern.permute.xlu0 8
    %924 = vperm.xlu0 %923, %v61
    %v925 = vpop.permute.xlu0 %924
    %vm926 = vcmp.eq.s32.totalorder %v925, %v143
    %v927 = vsel %vm926, 1, 0
    %v928 = vcvt.s32.f32 %v927
    %v929 = vpack.c.bf16 %v928, %v928
    %930 = vmatprep.subr.bf16.mxu0 0
    %931 = vmatpush1.bf16.msra.mxu0 %v339
    %932 = vmatprep.subr.bf16.mxu0 0
    %933 = vmatpush1.bf16.msra.mxu0 %v340
    %934 = vmatprep.subr.bf16.mxu0 0
    %935 = vmatpush1.bf16.msra.mxu0 %v341
    %936 = vmatprep.subr.bf16.mxu0 0
    %937 = vmatpush1.bf16.msra.mxu0 %v342
    %938 = vmatprep.subr.bf16.mxu0 0
    %939 = vmatpush1.bf16.msra.mxu0 %v343
    %940 = vmatprep.subr.bf16.mxu0 0
    %941 = vmatpush1.bf16.msra.mxu0 %v344
    %942 = vmatprep.subr.bf16.mxu0 0
    %943 = vmatpush1.bf16.msra.mxu0 %v345
    %944 = vmatprep.subr.bf16.mxu0 0
    %945 = vmatpush1.bf16.msra.mxu0 %v346
    %946 = vmatprep.subr.bf16.mxu0 0
    %947 = vmatpush1.bf16.msra.mxu0 %v347
    %948 = vmatprep.subr.bf16.mxu0 0
    %949 = vmatpush1.bf16.msra.mxu0 %v348
    %950 = vmatprep.subr.bf16.mxu0 0
    %951 = vmatpush1.bf16.msra.mxu0 %v349
    %952 = vmatprep.subr.bf16.mxu0 0
    %953 = vmatpush1.bf16.msra.mxu0 %v350
    %954 = vmatprep.subr.bf16.mxu0 0
    %955 = vmatpush1.bf16.msra.mxu0 %v351
    %956 = vmatprep.subr.bf16.mxu0 0
    %957 = vmatpush1.bf16.msra.mxu0 %v352
    %958 = vmatprep.subr.bf16.mxu0 0
    %959 = vmatpush1.bf16.msra.mxu0 %v353
    %960 = vmatprep.subr.bf16.mxu0 0
    %961 = vmatpush1.bf16.msra.mxu0 %v354
    %962 = vmatprep.mubr.bf16.mxu0 %v545
    %963 = vmatmul.mubr.bf16.gmra.mrb[0].mxu0 %v178
    %v964 = vpop.f32.mrb[0].mxu0
    %v965 = vadd.f32 0.0, %v964
    %v966 = vpop.f32.mrb[0].mxu0
    %v967 = vpop.f32.mrb[0].mxu0
    %v968 = vpop.f32.mrb[0].mxu0
    %969 = vdwg.mxu0
    %970 = vmatprep.subr.bf16.mxu0 0
    %971 = vmatpush1.bf16.msra.mxu0 %v355
    %972 = vmatprep.subr.bf16.mxu0 0
    %973 = vmatpush1.bf16.msra.mxu0 %v356
    %974 = vmatprep.subr.bf16.mxu0 0
    %975 = vmatpush1.bf16.msra.mxu0 %v357
    %976 = vmatprep.subr.bf16.mxu0 0
    %977 = vmatpush1.bf16.msra.mxu0 %v358
    %978 = vmatprep.subr.bf16.mxu0 0
    %979 = vmatpush1.bf16.msra.mxu0 %v359
    %980 = vmatprep.subr.bf16.mxu0 0
    %981 = vmatpush1.bf16.msra.mxu0 %v360
    %982 = vmatprep.subr.bf16.mxu0 0
    %983 = vmatpush1.bf16.msra.mxu0 %v361
    %984 = vmatprep.subr.bf16.mxu0 0
    %985 = vmatpush1.bf16.msra.mxu0 %v362
    %986 = vmatprep.subr.bf16.mxu0 0
    %987 = vmatpush1.bf16.msra.mxu0 %v363
    %988 = vmatprep.subr.bf16.mxu0 0
    %989 = vmatpush1.bf16.msra.mxu0 %v364
    %990 = vmatprep.subr.bf16.mxu0 0
    %991 = vmatpush1.bf16.msra.mxu0 %v365
    %992 = vmatprep.subr.bf16.mxu0 0
    %993 = vmatpush1.bf16.msra.mxu0 %v366
    %994 = vmatprep.subr.bf16.mxu0 0
    %995 = vmatpush1.bf16.msra.mxu0 %v367
    %996 = vmatprep.subr.bf16.mxu0 0
    %997 = vmatpush1.bf16.msra.mxu0 %v368
    %998 = vmatprep.subr.bf16.mxu0 0
    %999 = vmatpush1.bf16.msra.mxu0 %v369
    %1000 = vmatprep.subr.bf16.mxu0 0
    %1001 = vmatpush1.bf16.msra.mxu0 %v370
    %1002 = vmatprep.mubr.bf16.mxu0 %v801
    %1003 = vmatmul.mubr.bf16.gmra.mrb[0].mxu0 %v673
    %v1004 = vpop.f32.mrb[0].mxu0
    %v1005 = vadd.f32 %v965, %v1004
    %v1006 = vpop.f32.mrb[0].mxu0
    %v1007 = vpop.f32.mrb[0].mxu0
    %v1008 = vpop.f32.mrb[0].mxu0
    %1009 = vdwg.mxu0
    %1010 = vmatprep.subr.bf16.mxu0 0
    %1011 = vmatpush1.bf16.msra.mxu0 %v371
    %1012 = vmatprep.subr.bf16.mxu0 0
    %1013 = vmatpush1.bf16.msra.mxu0 %v372
    %1014 = vmatprep.subr.bf16.mxu0 0
    %1015 = vmatpush1.bf16.msra.mxu0 %v373
    %1016 = vmatprep.subr.bf16.mxu0 0
    %1017 = vmatpush1.bf16.msra.mxu0 %v374
    %1018 = vmatprep.subr.bf16.mxu0 0
    %1019 = vmatpush1.bf16.msra.mxu0 %v375
    %1020 = vmatprep.subr.bf16.mxu0 0
    %1021 = vmatpush1.bf16.msra.mxu0 %v376
    %1022 = vmatprep.subr.bf16.mxu0 0
    %1023 = vmatpush1.bf16.msra.mxu0 %v377
    %1024 = vmatprep.subr.bf16.mxu0 0
    %1025 = vmatpush1.bf16.msra.mxu0 %v378
    %1026 = vmatprep.subr.bf16.mxu0 0
    %1027 = vmatpush1.bf16.msra.mxu0 0
    %1028 = vmatprep.subr.bf16.mxu0 0
    %1029 = vmatpush1.bf16.msra.mxu0 0
    %1030 = vmatprep.subr.bf16.mxu0 0
    %1031 = vmatpush1.bf16.msra.mxu0 0
    %1032 = vmatprep.subr.bf16.mxu0 0
    %1033 = vmatpush1.bf16.msra.mxu0 0
    %1034 = vmatprep.subr.bf16.mxu0 0
    %1035 = vmatpush1.bf16.msra.mxu0 0
    %1036 = vmatprep.subr.bf16.mxu0 0
    %1037 = vmatpush1.bf16.msra.mxu0 0
    %1038 = vmatprep.subr.bf16.mxu0 0
    %1039 = vmatpush1.bf16.msra.mxu0 0
    %1040 = vmatprep.subr.bf16.mxu0 0
    %1041 = vmatpush1.bf16.msra.mxu0 0
    %1042 = vmatprep.mubr.bf16.mxu0 0
    %1043 = vmatmul.mubr.bf16.gmra.mrb[0].mxu0 %v929
    %v1044 = vpop.f32.mrb[0].mxu0
    %v1045 = vadd.f32 %v1005, %v1044
    %v1046 = vpop.f32.mrb[0].mxu0
    %v1047 = vpop.f32.mrb[0].mxu0
    %v1048 = vpop.f32.mrb[0].mxu0
    %1049 = vdwg.mxu0
    %v1050 = vmax.f32 %v922, %v1045
    %1051 = vset.pattern.permute.xlu0 9
    %1052 = vperm.xlu0 %1051, %v61
    %v1053 = vpop.permute.xlu0 %1052
    %vm1054 = vcmp.eq.s32.totalorder %v1053, %v143
    %v1055 = vsel %vm1054, 1, 0
    %v1056 = vcvt.s32.f32 %v1055
    %v1057 = vpack.c.bf16 %v1056, %v1056
    %1058 = vmatprep.subr.bf16.mxu0 0
    %1059 = vmatpush1.bf16.msra.mxu0 %v339
    %1060 = vmatprep.subr.bf16.mxu0 0
    %1061 = vmatpush1.bf16.msra.mxu0 %v340
    %1062 = vmatprep.subr.bf16.mxu0 0
    %1063 = vmatpush1.bf16.msra.mxu0 %v341
    %1064 = vmatprep.subr.bf16.mxu0 0
    %1065 = vmatpush1.bf16.msra.mxu0 %v342
    %1066 = vmatprep.subr.bf16.mxu0 0
    %1067 = vmatpush1.bf16.msra.mxu0 %v343
    %1068 = vmatprep.subr.bf16.mxu0 0
    %1069 = vmatpush1.bf16.msra.mxu0 %v344
    %1070 = vmatprep.subr.bf16.mxu0 0
    %1071 = vmatpush1.bf16.msra.mxu0 %v345
    %1072 = vmatprep.subr.bf16.mxu0 0
    %1073 = vmatpush1.bf16.msra.mxu0 %v346
    %1074 = vmatprep.subr.bf16.mxu0 0
    %1075 = vmatpush1.bf16.msra.mxu0 %v347
    %1076 = vmatprep.subr.bf16.mxu0 0
    %1077 = vmatpush1.bf16.msra.mxu0 %v348
    %1078 = vmatprep.subr.bf16.mxu0 0
    %1079 = vmatpush1.bf16.msra.mxu0 %v349
    %1080 = vmatprep.subr.bf16.mxu0 0
    %1081 = vmatpush1.bf16.msra.mxu0 %v350
    %1082 = vmatprep.subr.bf16.mxu0 0
    %1083 = vmatpush1.bf16.msra.mxu0 %v351
    %1084 = vmatprep.subr.bf16.mxu0 0
    %1085 = vmatpush1.bf16.msra.mxu0 %v352
    %1086 = vmatprep.subr.bf16.mxu0 0
    %1087 = vmatpush1.bf16.msra.mxu0 %v353
    %1088 = vmatprep.subr.bf16.mxu0 0
    %1089 = vmatpush1.bf16.msra.mxu0 %v354
    %1090 = vmatprep.mubr.bf16.mxu0 %v673
    %1091 = vmatmul.mubr.bf16.gmra.mrb[0].mxu0 %v545
    %v1092 = vpop.f32.mrb[0].mxu0
    %v1093 = vadd.f32 0.0, %v1092
    %v1094 = vpop.f32.mrb[0].mxu0
    %v1095 = vpop.f32.mrb[0].mxu0
    %v1096 = vpop.f32.mrb[0].mxu0
    %1097 = vdwg.mxu0
    %1098 = vmatprep.subr.bf16.mxu0 0
    %1099 = vmatpush1.bf16.msra.mxu0 %v355
    %1100 = vmatprep.subr.bf16.mxu0 0
    %1101 = vmatpush1.bf16.msra.mxu0 %v356
    %1102 = vmatprep.subr.bf16.mxu0 0
    %1103 = vmatpush1.bf16.msra.mxu0 %v357
    %1104 = vmatprep.subr.bf16.mxu0 0
    %1105 = vmatpush1.bf16.msra.mxu0 %v358
    %1106 = vmatprep.subr.bf16.mxu0 0
    %1107 = vmatpush1.bf16.msra.mxu0 %v359
    %1108 = vmatprep.subr.bf16.mxu0 0
    %1109 = vmatpush1.bf16.msra.mxu0 %v360
    %1110 = vmatprep.subr.bf16.mxu0 0
    %1111 = vmatpush1.bf16.msra.mxu0 %v361
    %1112 = vmatprep.subr.bf16.mxu0 0
    %1113 = vmatpush1.bf16.msra.mxu0 %v362
    %1114 = vmatprep.subr.bf16.mxu0 0
    %1115 = vmatpush1.bf16.msra.mxu0 %v363
    %1116 = vmatprep.subr.bf16.mxu0 0
    %1117 = vmatpush1.bf16.msra.mxu0 %v364
    %1118 = vmatprep.subr.bf16.mxu0 0
    %1119 = vmatpush1.bf16.msra.mxu0 %v365
    %1120 = vmatprep.subr.bf16.mxu0 0
    %1121 = vmatpush1.bf16.msra.mxu0 %v366
    %1122 = vmatprep.subr.bf16.mxu0 0
    %1123 = vmatpush1.bf16.msra.mxu0 %v367
    %1124 = vmatprep.subr.bf16.mxu0 0
    %1125 = vmatpush1.bf16.msra.mxu0 %v368
    %1126 = vmatprep.subr.bf16.mxu0 0
    %1127 = vmatpush1.bf16.msra.mxu0 %v369
    %1128 = vmatprep.subr.bf16.mxu0 0
    %1129 = vmatpush1.bf16.msra.mxu0 %v370
    %1130 = vmatprep.mubr.bf16.mxu0 %v929
    %1131 = vmatmul.mubr.bf16.gmra.mrb[0].mxu0 %v801
    %v1132 = vpop.f32.mrb[0].mxu0
    %v1133 = vadd.f32 %v1093, %v1132
    %v1134 = vpop.f32.mrb[0].mxu0
    %v1135 = vpop.f32.mrb[0].mxu0
    %v1136 = vpop.f32.mrb[0].mxu0
    %1137 = vdwg.mxu0
    %1138 = vmatprep.subr.bf16.mxu0 0
    %1139 = vmatpush1.bf16.msra.mxu0 %v371
    %1140 = vmatprep.subr.bf16.mxu0 0
    %1141 = vmatpush1.bf16.msra.mxu0 %v372
    %1142 = vmatprep.subr.bf16.mxu0 0
    %1143 = vmatpush1.bf16.msra.mxu0 %v373
    %1144 = vmatprep.subr.bf16.mxu0 0
    %1145 = vmatpush1.bf16.msra.mxu0 %v374
    %1146 = vmatprep.subr.bf16.mxu0 0
    %1147 = vmatpush1.bf16.msra.mxu0 %v375
    %1148 = vmatprep.subr.bf16.mxu0 0
    %1149 = vmatpush1.bf16.msra.mxu0 %v376
    %1150 = vmatprep.subr.bf16.mxu0 0
    %1151 = vmatpush1.bf16.msra.mxu0 %v377
    %1152 = vmatprep.subr.bf16.mxu0 0
    %1153 = vmatpush1.bf16.msra.mxu0 %v378
    %1154 = vmatprep.subr.bf16.mxu0 0
    %1155 = vmatpush1.bf16.msra.mxu0 0
    %1156 = vmatprep.subr.bf16.mxu0 0
    %1157 = vmatpush1.bf16.msra.mxu0 0
    %1158 = vmatprep.subr.bf16.mxu0 0
    %1159 = vmatpush1.bf16.msra.mxu0 0
    %1160 = vmatprep.subr.bf16.mxu0 0
    %1161 = vmatpush1.bf16.msra.mxu0 0
    %1162 = vmatprep.subr.bf16.mxu0 0
    %1163 = vmatpush1.bf16.msra.mxu0 0
    %1164 = vmatprep.subr.bf16.mxu0 0
    %1165 = vmatpush1.bf16.msra.mxu0 0
    %1166 = vmatprep.subr.bf16.mxu0 0
    %1167 = vmatpush1.bf16.msra.mxu0 0
    %1168 = vmatprep.subr.bf16.mxu0 0
    %1169 = vmatpush1.bf16.msra.mxu0 0
    %1170 = vmatprep.mubr.bf16.mxu0 0
    %1171 = vmatmul.mubr.bf16.gmra.mrb[0].mxu0 %v1057
    %v1172 = vpop.f32.mrb[0].mxu0
    %v1173 = vadd.f32 %v1133, %v1172
    %v1174 = vpop.f32.mrb[0].mxu0
    %v1175 = vpop.f32.mrb[0].mxu0
    %v1176 = vpop.f32.mrb[0].mxu0
    %1177 = vdwg.mxu0
    %v1178 = vmax.f32 %v1050, %v1173
    %1179 = vset.pattern.permute.xlu0 10
    %1180 = vperm.xlu0 %1179, %v61
    %v1181 = vpop.permute.xlu0 %1180
    %vm1182 = vcmp.eq.s32.totalorder %v1181, %v143
    %v1183 = vsel %vm1182, 1, 0
    %v1184 = vcvt.s32.f32 %v1183
    %v1185 = vpack.c.bf16 %v1184, %v1184
    %1186 = vmatprep.subr.bf16.mxu0 0
    %1187 = vmatpush1.bf16.msra.mxu0 %v339
    %1188 = vmatprep.subr.bf16.mxu0 0
    %1189 = vmatpush1.bf16.msra.mxu0 %v340
    %1190 = vmatprep.subr.bf16.mxu0 0
    %1191 = vmatpush1.bf16.msra.mxu0 %v341
    %1192 = vmatprep.subr.bf16.mxu0 0
    %1193 = vmatpush1.bf16.msra.mxu0 %v342
    %1194 = vmatprep.subr.bf16.mxu0 0
    %1195 = vmatpush1.bf16.msra.mxu0 %v343
    %1196 = vmatprep.subr.bf16.mxu0 0
    %1197 = vmatpush1.bf16.msra.mxu0 %v344
    %1198 = vmatprep.subr.bf16.mxu0 0
    %1199 = vmatpush1.bf16.msra.mxu0 %v345
    %1200 = vmatprep.subr.bf16.mxu0 0
    %1201 = vmatpush1.bf16.msra.mxu0 %v346
    %1202 = vmatprep.subr.bf16.mxu0 0
    %1203 = vmatpush1.bf16.msra.mxu0 %v347
    %1204 = vmatprep.subr.bf16.mxu0 0
    %1205 = vmatpush1.bf16.msra.mxu0 %v348
    %1206 = vmatprep.subr.bf16.mxu0 0
    %1207 = vmatpush1.bf16.msra.mxu0 %v349
    %1208 = vmatprep.subr.bf16.mxu0 0
    %1209 = vmatpush1.bf16.msra.mxu0 %v350
    %1210 = vmatprep.subr.bf16.mxu0 0
    %1211 = vmatpush1.bf16.msra.mxu0 %v351
    %1212 = vmatprep.subr.bf16.mxu0 0
    %1213 = vmatpush1.bf16.msra.mxu0 %v352
    %1214 = vmatprep.subr.bf16.mxu0 0
    %1215 = vmatpush1.bf16.msra.mxu0 %v353
    %1216 = vmatprep.subr.bf16.mxu0 0
    %1217 = vmatpush1.bf16.msra.mxu0 %v354
    %1218 = vmatprep.mubr.bf16.mxu0 %v801
    %1219 = vmatmul.mubr.bf16.gmra.mrb[0].mxu0 %v673
    %v1220 = vpop.f32.mrb[0].mxu0
    %v1221 = vadd.f32 0.0, %v1220
    %v1222 = vpop.f32.mrb[0].mxu0
    %v1223 = vpop.f32.mrb[0].mxu0
    %v1224 = vpop.f32.mrb[0].mxu0
    %1225 = vdwg.mxu0
    %1226 = vmatprep.subr.bf16.mxu0 0
    %1227 = vmatpush1.bf16.msra.mxu0 %v355
    %1228 = vmatprep.subr.bf16.mxu0 0
    %1229 = vmatpush1.bf16.msra.mxu0 %v356
    %1230 = vmatprep.subr.bf16.mxu0 0
    %1231 = vmatpush1.bf16.msra.mxu0 %v357
    %1232 = vmatprep.subr.bf16.mxu0 0
    %1233 = vmatpush1.bf16.msra.mxu0 %v358
    %1234 = vmatprep.subr.bf16.mxu0 0
    %1235 = vmatpush1.bf16.msra.mxu0 %v359
    %1236 = vmatprep.subr.bf16.mxu0 0
    %1237 = vmatpush1.bf16.msra.mxu0 %v360
    %1238 = vmatprep.subr.bf16.mxu0 0
    %1239 = vmatpush1.bf16.msra.mxu0 %v361
    %1240 = vmatprep.subr.bf16.mxu0 0
    %1241 = vmatpush1.bf16.msra.mxu0 %v362
    %1242 = vmatprep.subr.bf16.mxu0 0
    %1243 = vmatpush1.bf16.msra.mxu0 %v363
    %1244 = vmatprep.subr.bf16.mxu0 0
    %1245 = vmatpush1.bf16.msra.mxu0 %v364
    %1246 = vmatprep.subr.bf16.mxu0 0
    %1247 = vmatpush1.bf16.msra.mxu0 %v365
    %1248 = vmatprep.subr.bf16.mxu0 0
    %1249 = vmatpush1.bf16.msra.mxu0 %v366
    %1250 = vmatprep.subr.bf16.mxu0 0
    %1251 = vmatpush1.bf16.msra.mxu0 %v367
    %1252 = vmatprep.subr.bf16.mxu0 0
    %1253 = vmatpush1.bf16.msra.mxu0 %v368
    %1254 = vmatprep.subr.bf16.mxu0 0
    %1255 = vmatpush1.bf16.msra.mxu0 %v369
    %1256 = vmatprep.subr.bf16.mxu0 0
    %1257 = vmatpush1.bf16.msra.mxu0 %v370
    %1258 = vmatprep.mubr.bf16.mxu0 %v1057
    %1259 = vmatmul.mubr.bf16.gmra.mrb[0].mxu0 %v929
    %v1260 = vpop.f32.mrb[0].mxu0
    %v1261 = vadd.f32 %v1221, %v1260
    %v1262 = vpop.f32.mrb[0].mxu0
    %v1263 = vpop.f32.mrb[0].mxu0
    %v1264 = vpop.f32.mrb[0].mxu0
    %1265 = vdwg.mxu0
    %1266 = vmatprep.subr.bf16.mxu0 0
    %1267 = vmatpush1.bf16.msra.mxu0 %v371
    %1268 = vmatprep.subr.bf16.mxu0 0
    %1269 = vmatpush1.bf16.msra.mxu0 %v372
    %1270 = vmatprep.subr.bf16.mxu0 0
    %1271 = vmatpush1.bf16.msra.mxu0 %v373
    %1272 = vmatprep.subr.bf16.mxu0 0
    %1273 = vmatpush1.bf16.msra.mxu0 %v374
    %1274 = vmatprep.subr.bf16.mxu0 0
    %1275 = vmatpush1.bf16.msra.mxu0 %v375
    %1276 = vmatprep.subr.bf16.mxu0 0
    %1277 = vmatpush1.bf16.msra.mxu0 %v376
    %1278 = vmatprep.subr.bf16.mxu0 0
    %1279 = vmatpush1.bf16.msra.mxu0 %v377
    %1280 = vmatprep.subr.bf16.mxu0 0
    %1281 = vmatpush1.bf16.msra.mxu0 %v378
    %1282 = vmatprep.subr.bf16.mxu0 0
    %1283 = vmatpush1.bf16.msra.mxu0 0
    %1284 = vmatprep.subr.bf16.mxu0 0
    %1285 = vmatpush1.bf16.msra.mxu0 0
    %1286 = vmatprep.subr.bf16.mxu0 0
    %1287 = vmatpush1.bf16.msra.mxu0 0
    %1288 = vmatprep.subr.bf16.mxu0 0
    %1289 = vmatpush1.bf16.msra.mxu0 0
    %1290 = vmatprep.subr.bf16.mxu0 0
    %1291 = vmatpush1.bf16.msra.mxu0 0
    %1292 = vmatprep.subr.bf16.mxu0 0
    %1293 = vmatpush1.bf16.msra.mxu0 0
    %1294 = vmatprep.subr.bf16.mxu0 0
    %1295 = vmatpush1.bf16.msra.mxu0 0
    %1296 = vmatprep.subr.bf16.mxu0 0
    %1297 = vmatpush1.bf16.msra.mxu0 0
    %1298 = vmatprep.mubr.bf16.mxu0 0
    %1299 = vmatmul.mubr.bf16.gmra.mrb[0].mxu0 %v1185
    %v1300 = vpop.f32.mrb[0].mxu0
    %v1301 = vadd.f32 %v1261, %v1300
    %v1302 = vpop.f32.mrb[0].mxu0
    %v1303 = vpop.f32.mrb[0].mxu0
    %v1304 = vpop.f32.mrb[0].mxu0
    %1305 = vdwg.mxu0
    %v1306 = vmax.f32 %v1178, %v1301
    %1307 = vset.pattern.permute.xlu0 11
    %1308 = vperm.xlu0 %1307, %v61
    %v1309 = vpop.permute.xlu0 %1308
    %vm1310 = vcmp.eq.s32.totalorder %v1309, %v143
    %v1311 = vsel %vm1310, 1, 0
    %v1312 = vcvt.s32.f32 %v1311
    %v1313 = vpack.c.bf16 %v1312, %v1312
    %1314 = vmatprep.subr.bf16.mxu0 0
    %1315 = vmatpush1.bf16.msra.mxu0 %v339
    %1316 = vmatprep.subr.bf16.mxu0 0
    %1317 = vmatpush1.bf16.msra.mxu0 %v340
    %1318 = vmatprep.subr.bf16.mxu0 0
    %1319 = vmatpush1.bf16.msra.mxu0 %v341
    %1320 = vmatprep.subr.bf16.mxu0 0
    %1321 = vmatpush1.bf16.msra.mxu0 %v342
    %1322 = vmatprep.subr.bf16.mxu0 0
    %1323 = vmatpush1.bf16.msra.mxu0 %v343
    %1324 = vmatprep.subr.bf16.mxu0 0
    %1325 = vmatpush1.bf16.msra.mxu0 %v344
    %1326 = vmatprep.subr.bf16.mxu0 0
    %1327 = vmatpush1.bf16.msra.mxu0 %v345
    %1328 = vmatprep.subr.bf16.mxu0 0
    %1329 = vmatpush1.bf16.msra.mxu0 %v346
    %1330 = vmatprep.subr.bf16.mxu0 0
    %1331 = vmatpush1.bf16.msra.mxu0 %v347
    %1332 = vmatprep.subr.bf16.mxu0 0
    %1333 = vmatpush1.bf16.msra.mxu0 %v348
    %1334 = vmatprep.subr.bf16.mxu0 0
    %1335 = vmatpush1.bf16.msra.mxu0 %v349
    %1336 = vmatprep.subr.bf16.mxu0 0
    %1337 = vmatpush1.bf16.msra.mxu0 %v350
    %1338 = vmatprep.subr.bf16.mxu0 0
    %1339 = vmatpush1.bf16.msra.mxu0 %v351
    %1340 = vmatprep.subr.bf16.mxu0 0
    %1341 = vmatpush1.bf16.msra.mxu0 %v352
    %1342 = vmatprep.subr.bf16.mxu0 0
    %1343 = vmatpush1.bf16.msra.mxu0 %v353
    %1344 = vmatprep.subr.bf16.mxu0 0
    %1345 = vmatpush1.bf16.msra.mxu0 %v354
    %1346 = vmatprep.mubr.bf16.mxu0 %v929
    %1347 = vmatmul.mubr.bf16.gmra.mrb[0].mxu0 %v801
    %v1348 = vpop.f32.mrb[0].mxu0
    %v1349 = vadd.f32 0.0, %v1348
    %v1350 = vpop.f32.mrb[0].mxu0
    %v1351 = vpop.f32.mrb[0].mxu0
    %v1352 = vpop.f32.mrb[0].mxu0
    %1353 = vdwg.mxu0
    %1354 = vmatprep.subr.bf16.mxu0 0
    %1355 = vmatpush1.bf16.msra.mxu0 %v355
    %1356 = vmatprep.subr.bf16.mxu0 0
    %1357 = vmatpush1.bf16.msra.mxu0 %v356
    %1358 = vmatprep.subr.bf16.mxu0 0
    %1359 = vmatpush1.bf16.msra.mxu0 %v357
    %1360 = vmatprep.subr.bf16.mxu0 0
    %1361 = vmatpush1.bf16.msra.mxu0 %v358
    %1362 = vmatprep.subr.bf16.mxu0 0
    %1363 = vmatpush1.bf16.msra.mxu0 %v359
    %1364 = vmatprep.subr.bf16.mxu0 0
    %1365 = vmatpush1.bf16.msra.mxu0 %v360
    %1366 = vmatprep.subr.bf16.mxu0 0
    %1367 = vmatpush1.bf16.msra.mxu0 %v361
    %1368 = vmatprep.subr.bf16.mxu0 0
    %1369 = vmatpush1.bf16.msra.mxu0 %v362
    %1370 = vmatprep.subr.bf16.mxu0 0
    %1371 = vmatpush1.bf16.msra.mxu0 %v363
    %1372 = vmatprep.subr.bf16.mxu0 0
    %1373 = vmatpush1.bf16.msra.mxu0 %v364
    %1374 = vmatprep.subr.bf16.mxu0 0
    %1375 = vmatpush1.bf16.msra.mxu0 %v365
    %1376 = vmatprep.subr.bf16.mxu0 0
    %1377 = vmatpush1.bf16.msra.mxu0 %v366
    %1378 = vmatprep.subr.bf16.mxu0 0
    %1379 = vmatpush1.bf16.msra.mxu0 %v367
    %1380 = vmatprep.subr.bf16.mxu0 0
    %1381 = vmatpush1.bf16.msra.mxu0 %v368
    %1382 = vmatprep.subr.bf16.mxu0 0
    %1383 = vmatpush1.bf16.msra.mxu0 %v369
    %1384 = vmatprep.subr.bf16.mxu0 0
    %1385 = vmatpush1.bf16.msra.mxu0 %v370
    %1386 = vmatprep.mubr.bf16.mxu0 %v1185
    %1387 = vmatmul.mubr.bf16.gmra.mrb[0].mxu0 %v1057
    %v1388 = vpop.f32.mrb[0].mxu0
    %v1389 = vadd.f32 %v1349, %v1388
    %v1390 = vpop.f32.mrb[0].mxu0
    %v1391 = vpop.f32.mrb[0].mxu0
    %v1392 = vpop.f32.mrb[0].mxu0
    %1393 = vdwg.mxu0
    %1394 = vmatprep.subr.bf16.mxu0 0
    %1395 = vmatpush1.bf16.msra.mxu0 %v371
    %1396 = vmatprep.subr.bf16.mxu0 0
    %1397 = vmatpush1.bf16.msra.mxu0 %v372
    %1398 = vmatprep.subr.bf16.mxu0 0
    %1399 = vmatpush1.bf16.msra.mxu0 %v373
    %1400 = vmatprep.subr.bf16.mxu0 0
    %1401 = vmatpush1.bf16.msra.mxu0 %v374
    %1402 = vmatprep.subr.bf16.mxu0 0
    %1403 = vmatpush1.bf16.msra.mxu0 %v375
    %1404 = vmatprep.subr.bf16.mxu0 0
    %1405 = vmatpush1.bf16.msra.mxu0 %v376
    %1406 = vmatprep.subr.bf16.mxu0 0
    %1407 = vmatpush1.bf16.msra.mxu0 %v377
    %1408 = vmatprep.subr.bf16.mxu0 0
    %1409 = vmatpush1.bf16.msra.mxu0 %v378
    %1410 = vmatprep.subr.bf16.mxu0 0
    %1411 = vmatpush1.bf16.msra.mxu0 0
    %1412 = vmatprep.subr.bf16.mxu0 0
    %1413 = vmatpush1.bf16.msra.mxu0 0
    %1414 = vmatprep.subr.bf16.mxu0 0
    %1415 = vmatpush1.bf16.msra.mxu0 0
    %1416 = vmatprep.subr.bf16.mxu0 0
    %1417 = vmatpush1.bf16.msra.mxu0 0
    %1418 = vmatprep.subr.bf16.mxu0 0
    %1419 = vmatpush1.bf16.msra.mxu0 0
    %1420 = vmatprep.subr.bf16.mxu0 0
    %1421 = vmatpush1.bf16.msra.mxu0 0
    %1422 = vmatprep.subr.bf16.mxu0 0
    %1423 = vmatpush1.bf16.msra.mxu0 0
    %1424 = vmatprep.subr.bf16.mxu0 0
    %1425 = vmatpush1.bf16.msra.mxu0 0
    %1426 = vmatprep.mubr.bf16.mxu0 0
    %1427 = vmatmul.mubr.bf16.gmra.mrb[0].mxu0 %v1313
    %v1428 = vpop.f32.mrb[0].mxu0
    %v1429 = vadd.f32 %v1389, %v1428
    %v1430 = vpop.f32.mrb[0].mxu0
    %v1431 = vpop.f32.mrb[0].mxu0
    %v1432 = vpop.f32.mrb[0].mxu0
    %1433 = vdwg.mxu0
    %v1434 = vmax.f32 %v1306, %v1429
    %v1435 = vld [vmem:[%s2] sm:$0x1]
    %v1437 = vlaneseq
    %v1438 = vshrl.u32 %v1437, 7
    %v1439 = vsub.s32 0, %v1438
    %v1440 = vrot.slane %v1435, %v1439
    %v1442 = vadd.f32 %v1434, %v1440
    %v1443 = vmax.f32 %v1442, 0.0
    %v1444 = vpack.c.bf16 %v1443, %v1443
    %v1445 = vld [vmem:[#allocation7] sm:$0xff]
    %v1446 = vld [vmem:[#allocation7 + $0x8] sm:$0xff]
    %v1447 = vld [vmem:[#allocation7 + $0x10] sm:$0xff]
    %v1448 = vld [vmem:[#allocation7 + $0x18] sm:$0xff]
    %v1449 = vld [vmem:[#allocation7 + $0x20] sm:$0xff]
    %v1450 = vld [vmem:[#allocation7 + $0x28] sm:$0xff]
    %v1451 = vld [vmem:[#allocation7 + $0x30] sm:$0xff]
    %v1452 = vld [vmem:[#allocation7 + $0x38] sm:$0xff]
    %v1453 = vld [vmem:[#allocation7 + $0x40] sm:$0xff]
    %v1454 = vld [vmem:[#allocation7 + $0x48] sm:$0xff]
    %v1455 = vld [vmem:[#allocation7 + $0x50] sm:$0xff]
    %v1456 = vld [vmem:[#allocation7 + $0x58] sm:$0xff]
    %v1457 = vld [vmem:[#allocation7 + $0x60] sm:$0xff]
    %v1458 = vld [vmem:[#allocation7 + $0x68] sm:$0xff]
    %v1459 = vld [vmem:[#allocation7 + $0x70] sm:$0xff]
    %v1460 = vld [vmem:[#allocation7 + $0x78] sm:$0xff]
    %v1461 = vld [vmem:[%s4] sm:$0x3]
    %v1463 = vlaneseq
    %v1464 = vshrl.u32 %v1463, 7
    %v1465 = vsub.s32 0, %v1464
    %v1466 = vrot.slane %v1461, %v1465
    %v1467 = vlaneseq
    %v1468 = vshrl.u32 %v1467, 7
    %v1469 = vsub.s32 1, %v1468
    %v1470 = vrot.slane %v1461, %v1469
    %v1489 = vunpack.c.l.b16 %v1445
    %v1490 = vunpack.c.h.b16 %v1445
    %v1491 = vunpack.c.l.b16 %v1446
    %v1492 = vunpack.c.h.b16 %v1446
    %v1493 = vunpack.c.l.b16 %v1447
    %v1494 = vunpack.c.h.b16 %v1447
    %v1495 = vunpack.c.l.b16 %v1448
    %v1496 = vunpack.c.h.b16 %v1448
    %v1497 = vunpack.c.l.b16 %v1449
    %v1498 = vunpack.c.h.b16 %v1449
    %v1499 = vunpack.c.l.b16 %v1450
    %v1500 = vunpack.c.h.b16 %v1450
    %v1501 = vunpack.c.l.b16 %v1451
    %v1502 = vunpack.c.h.b16 %v1451
    %v1503 = vunpack.c.l.b16 %v1452
    %v1504 = vunpack.c.h.b16 %v1452
    %v1505 = vunpack.c.l.b16 %v1453
    %v1506 = vunpack.c.h.b16 %v1453
    %v1507 = vunpack.c.l.b16 %v1454
    %v1508 = vunpack.c.h.b16 %v1454
    %v1509 = vunpack.c.l.b16 %v1455
    %v1510 = vunpack.c.h.b16 %v1455
    %v1511 = vunpack.c.l.b16 %v1456
    %v1512 = vunpack.c.h.b16 %v1456
    %v1513 = vunpack.c.l.b16 %v1457
    %v1514 = vunpack.c.h.b16 %v1457
    %v1515 = vunpack.c.l.b16 %v1458
    %v1516 = vunpack.c.h.b16 %v1458
    %v1517 = vunpack.c.l.b16 %v1459
    %v1518 = vunpack.c.h.b16 %v1459
    %v1519 = vunpack.c.l.b16 %v1460
    %v1520 = vunpack.c.h.b16 %v1460
    %v1521 = vpack.c.b16 %v1491, %v1489
    %v1522 = vpack.c.b16 %v1492, %v1490
    %v1523 = vpack.c.b16 %v1495, %v1493
    %v1524 = vpack.c.b16 %v1496, %v1494
    %v1525 = vpack.c.b16 %v1499, %v1497
    %v1526 = vpack.c.b16 %v1500, %v1498
    %v1527 = vpack.c.b16 %v1503, %v1501
    %v1528 = vpack.c.b16 %v1504, %v1502
    %v1529 = vpack.c.b16 %v1507, %v1505
    %v1530 = vpack.c.b16 %v1508, %v1506
    %v1531 = vpack.c.b16 %v1511, %v1509
    %v1532 = vpack.c.b16 %v1512, %v1510
    %v1533 = vpack.c.b16 %v1515, %v1513
    %v1534 = vpack.c.b16 %v1516, %v1514
    %v1535 = vpack.c.b16 %v1519, %v1517
    %v1536 = vpack.c.b16 %v1520, %v1518
    %1553 = vmatprep.subr.bf16.mxu0 %v1522
    %1554 = vmatpush1.bf16.msra.mxu0 %v1521
    %1555 = vmatprep.subr.bf16.mxu0 %v1524
    %1556 = vmatpush1.bf16.msra.mxu0 %v1523
    %1557 = vmatprep.subr.bf16.mxu0 %v1526
    %1558 = vmatpush1.bf16.msra.mxu0 %v1525
    %1559 = vmatprep.subr.bf16.mxu0 %v1528
    %1560 = vmatpush1.bf16.msra.mxu0 %v1527
    %1561 = vmatprep.subr.bf16.mxu0 %v1530
    %1562 = vmatpush1.bf16.msra.mxu0 %v1529
    %1563 = vmatprep.subr.bf16.mxu0 %v1532
    %1564 = vmatpush1.bf16.msra.mxu0 %v1531
    %1565 = vmatprep.subr.bf16.mxu0 %v1534
    %1566 = vmatpush1.bf16.msra.mxu0 %v1533
    %1567 = vmatprep.subr.bf16.mxu0 %v1536
    %1568 = vmatpush1.bf16.msra.mxu0 %v1535
    %1569 = vmatprep.subr.bf16.mxu0 0
    %1570 = vmatpush1.bf16.msra.mxu0 0
    %1571 = vmatprep.subr.bf16.mxu0 0
    %1572 = vmatpush1.bf16.msra.mxu0 0
    %1573 = vmatprep.subr.bf16.mxu0 0
    %1574 = vmatpush1.bf16.msra.mxu0 0
    %1575 = vmatprep.subr.bf16.mxu0 0
    %1576 = vmatpush1.bf16.msra.mxu0 0
    %1577 = vmatprep.subr.bf16.mxu0 0
    %1578 = vmatpush1.bf16.msra.mxu0 0
    %1579 = vmatprep.subr.bf16.mxu0 0
    %1580 = vmatpush1.bf16.msra.mxu0 0
    %1581 = vmatprep.subr.bf16.mxu0 0
    %1582 = vmatpush1.bf16.msra.mxu0 0
    %1583 = vmatprep.subr.bf16.mxu0 0
    %1584 = vmatpush1.bf16.msra.mxu0 0
    %1585 = vmatprep.mubr.bf16.mxu0 0
    %1586 = vmatmul.mubr.bf16.gmra.mrb[0].mxu0 %v1444
    %v1587 = vpop.f32.mrb[0].mxu0
    %v1588 = vadd.f32 %v1466, %v1587
    %v1589 = vpop.f32.mrb[0].mxu0
    %v1590 = vadd.f32 %v1470, %v1589
    %v1591 = vpop.f32.mrb[0].mxu0
    %v1592 = vpop.f32.mrb[0].mxu0
    %1593 = vdwg.mxu0
    %v1594 = vmax.f32 %v1588, 0.0
    %v1595 = vxor.u32 %v1590, 2147483648
    %v1596 = vmul.f32 %v1595, 1.442695
    %v1597 = vpow.pop %v1596
    %v1598 = vadd.f32 %v1597, 1.0
    %v1599 = vrcp.pop %v1598
    %v1600 = vmul.f32 1.0, %v1599
    %v1601 = vmul.f32 %v1600, %v1594
    %v1602 = vsub.f32 1.0, %v1600
    %v1603 = vmul.f32 %v1602, %v1443
    %v1604 = vadd.f32 %v1601, %v1603
    %1605 = vst [vmem:[#allocation8] sm:$0xff] %v1604
    // Predicated region
    $region34: #{tpu_custom_call.1} parent=1 // pred_check
      _
    $region35: #{tpu_custom_call.1} parent=1 // pred_check_branch
      %1607 = sbr.rel (0) target = $region37
    $region36: #{tpu_custom_call.1} parent=1 // pred_region
      %s1609 = ssub.s32 128, 128
      %1610 = vsyncadd [#allocation4], %s1609
      %s1612 = sshll.u32 [#allocation8], 4
      %s1613 = int_to_ptr.vmem [resolvable:$true] %s1612
      %1615 = dma.vmem_to_hbm [thread:$0]  %s1613, 128, %s5, [#allocation4]
    $region37: #{tpu_custom_call.1} parent=1 // pred_fallthru
      _
    // Predicated region
    $region38: #{tpu_custom_call.1} parent=1 // pred_check
      _
    $region39: #{tpu_custom_call.1} parent=1 // pred_check_branch
      %1617 = sbr.rel (0) target = $region41
    $region40: #{tpu_custom_call.1} parent=1 // pred_region
      %1618 = dma.done [#allocation4], 128
    $region41: #{tpu_custom_call.1} parent=1 // pred_fallthru
      _
    %1619 = vsyncpa [#allocation3], 1
    %1620 = vsyncpa [#allocation6], 1
    %1621 = vsyncpa [#allocation4], 1

</llo_original>
